<compile_context>
chip_gen: v6e
topology: v6e:2x2x1
jax: 0.10.0
libtpu: 0.0.40
codegen_flags: <defaults>
</compile_context>

<pallas_src>
import functools
import math
import re

import numpy as np

import jax
import jax.numpy as jnp
from jax.experimental import pallas as pl
from jax.experimental.pallas import tpu as pltpu

_LANE = 128                    # TPU lane width (last-dim tiling unit)
_SUBLANE = 8                   # sublane granularity for row tiles
_MIB = 1024 * 1024
_SQRT_2_OVER_PI = math.sqrt(2.0 / math.pi)


def _round_up(x, m):
    return (x + m - 1) // m * m


def _gelu(x, approximate):
    """GELU. approximate=False: exact erf (PyTorch nn.GELU() default, VPU
    polynomial). approximate=True: tanh form (PyTorch approximate='tanh'),
    routed through the EUP tanh slot -> much cheaper on the binding VALU."""
    if approximate:
        return 0.5 * x * (1.0 + jnp.tanh(_SQRT_2_OVER_PI * (x + 0.044715 * (x * x * x))))
    return 0.5 * x * (1.0 + jax.lax.erf(x * (1.0 / math.sqrt(2.0))))


# ---------------------------------------------------------------------------
# Kernel
# ---------------------------------------------------------------------------
def _fc_trunk_kernel(num_layers, gelu_approximate, hidden_act_bf16,
                     x_ref, *refs):
    """Fused MLP for one row tile.

    refs = (w0, b0, w1, b1, ..., w_{L-1}, b_{L-1}, out_ref); GELU is applied
    after EVERY linear (FCTrunk semantics). x is read as f32 and cast to bf16
    on the VPU (hidden under the DMA pipeline); matmuls are bf16 MXU with f32
    accumulation; hidden activations are bf16 on v6e/v7x, f32 otherwise; the
    final activation is always f32 and only the valid columns are stored.
    """
    out_ref = refs[-1]
    wb = refs[:-1]
    h = x_ref[...].astype(jnp.bfloat16)              # f32 HBM read, VPU cast
    for i in range(num_layers):
        w = wb[2 * i][...]                           # (in_p, out_p) bf16
        b = wb[2 * i + 1][...]                       # (1, out_p)    f32
        acc = jnp.dot(h, w, preferred_element_type=jnp.float32) + b
        if i < num_layers - 1:
            if hidden_act_bf16:                      # bf16 VPU/EUP (v6e/v7x)
                h = _gelu(acc.astype(jnp.bfloat16), gelu_approximate)
            else:                                    # f32 (v5e and older)
                h = _gelu(acc, gelu_approximate).astype(jnp.bfloat16)
        else:
            act = _gelu(acc, gelu_approximate)       # final GELU in f32
            out_ref[...] = act[:, :out_ref.shape[-1]].astype(out_ref.dtype)


# ---------------------------------------------------------------------------
# Parameter init / prep
# ---------------------------------------------------------------------------
def init_fc_trunk_params(key, input_size, hidden_size, output_size, num_outputs,
                         num_hidden_layers, dtype=jnp.float32):
    """PyTorch-Linear-style init (assumes num_hidden_layers >= 1).
    Weights are stored transposed as (in, out)."""
    dims = ([input_size] + [hidden_size] * num_hidden_layers
            + [output_size * num_outputs])
    weights, biases = [], []
    for i in range(len(dims) - 1):
        fan_in, fan_out = dims[i], dims[i + 1]
        key, kw, kb = jax.random.split(key, 3)
        bound = 1.0 / math.sqrt(fan_in)
        weights.append(jax.random.uniform(kw, (fan_in, fan_out), dtype, -bound, bound))
        biases.append(jax.random.uniform(kb, (fan_out,), dtype, -bound, bound))
    return weights, biases


def prepare_fc_trunk_params(weights, biases, compute_dtype=jnp.bfloat16):
    """One-time prep: zero-pad every contraction / output dim to a multiple of
    128 lanes (including the first layer's in-dim), cast weights to the MXU
    compute dtype, and store biases as (1, out) f32. Exact: padded rows/cols
    carry zeros and GELU(0) == 0, so valid columns are unchanged."""
    padded_w, padded_b = [], []
    prev_in_p = _round_up(weights[0].shape[0], _LANE)
    for w, b in zip(weights, biases):
        in_dim, out_dim = w.shape
        out_p = _round_up(out_dim, _LANE)
        w_p = jnp.zeros((prev_in_p, out_p), compute_dtype)
        w_p = w_p.at[:in_dim, :out_dim].set(w.astype(compute_dtype))
        b_p = jnp.zeros((1, out_p), jnp.float32)
        b_p = b_p.at[0, :out_dim].set(b.astype(jnp.float32))
        padded_w.append(w_p)
        padded_b.append(b_p)
        prev_in_p = out_p
    return padded_w, padded_b


# ---------------------------------------------------------------------------
# Generation-aware tiling / VMEM budgeting
# ---------------------------------------------------------------------------
def _tpu_generation():
    try:
        kind = jax.devices()[0].device_kind.lower()
    except Exception:
        return 0
    m = re.search(r"(\d+)", kind)      # "tpu v5 lite" -> 5, "tpu7x" -> 7, ...
    return int(m.group(1)) if m else 0


def _tpu_config():
    gen = _tpu_generation()
    if gen >= 7:    # 64 MiB VMEM, 2 TCs, bf16 VPU/EUP
        return dict(hidden_act_bf16=True, max_row_tile=512, vmem_cap=48 * _MIB)
    if gen == 6:    # 128 MiB VMEM, bf16 VPU/EUP
        return dict(hidden_act_bf16=True, max_row_tile=1024, vmem_cap=96 * _MIB)
    if gen == 5:    # 128 MiB VMEM, no bf16 VALU/EUP
        return dict(hidden_act_bf16=False, max_row_tile=1024, vmem_cap=96 * _MIB)
    return dict(hidden_act_bf16=False, max_row_tile=512, vmem_cap=32 * _MIB)


def _choose_row_tile(num_rows, max_row_tile):
    if num_rows <= _SUBLANE:
        return num_rows                               # single full-extent block
    # >= 2 grid steps so v7x's second TensorCore gets work; tiles are multiples
    # of 8 sublanes, capped per generation (amortizes the ~0.35us/step overhead
    # without blowing VMEM).
    half = (num_rows + 1) // 2
    return min(max_row_tile, _round_up(half, _SUBLANE))


def _vmem_budget(weights, biases, tm, in_p, out_features, out_itemsize, cap):
    w_bytes = sum(w.size * w.dtype.itemsize for w in weights)
    b_bytes = sum(b.size * b.dtype.itemsize for b in biases)
    max_out_p = max(w.shape[1] for w in weights)
    est = (2 * (w_bytes + b_bytes)                    # worst case double-buffered
           + 2 * tm * in_p * 4                        # f32 x tiles (2 buffers)
           + 2 * tm * out_features * out_itemsize     # output tiles (2 buffers)
           + 4 * tm * max_out_p * 4)                  # live f32 intermediates
    return int(min(cap, max(32 * _MIB, 2 * est)))


# ---------------------------------------------------------------------------
# pallas_call wrapper
# ---------------------------------------------------------------------------
@functools.partial(
    jax.jit,
    static_argnames=("out_features", "num_outputs", "gelu_approximate",
                     "hidden_act_bf16", "single_buffer_weights", "out_dtype",
                     "row_tile", "vmem_limit_bytes"))
def _fc_trunk_pallas(x, weights, biases, *, out_features, num_outputs,
                     gelu_approximate, hidden_act_bf16, single_buffer_weights,
                     out_dtype, row_tile, vmem_limit_bytes):
    B, N, in_dim = x.shape
    R = B * N
    num_layers = len(weights)
    in_p = weights[0].shape[0]

    x2 = x.reshape(R, in_dim)                         # stays f32 (no wrapper cast)
    if in_p != in_dim:                                # exact zero lane-padding of K
        x2 = jnp.pad(x2, ((0, 0), (0, in_p - in_dim)))

    tm = row_tile
    grid = (pl.cdiv(R, tm),)

    # Weights/biases are VMEM-resident (constant index_map). Request
    # single-buffering so they don't pay the default 2x pipelining footprint.
    resident_kwargs = {}
    if single_buffer_weights:
        resident_kwargs = dict(pipeline_mode=pl.Buffered(1))

    args = [x2]
    in_specs = [pl.BlockSpec((tm, in_p), lambda i: (i, 0))]
    for w, b in zip(weights, biases):
        args.extend([w, b])
        in_specs.append(pl.BlockSpec(w.shape, lambda i: (0, 0), **resident_kwargs))
        in_specs.append(pl.BlockSpec(b.shape, lambda i: (0, 0), **resident_kwargs))

    out_isize = np.dtype(out_dtype).itemsize
    cost = pl.CostEstimate(
        flops=2 * R * sum(w.shape[0] * w.shape[1] for w in weights),
        transcendentals=R * sum(w.shape[1] for w in weights),
        bytes_accessed=(x2.size * x2.dtype.itemsize
                        + sum(w.size * w.dtype.itemsize for w in weights)
                        + sum(b.size * b.dtype.itemsize for b in biases)
                        + R * out_features * out_isize))

    out = pl.pallas_call(
        functools.partial(_fc_trunk_kernel, num_layers, gelu_approximate,
                          hidden_act_bf16),
        out_shape=jax.ShapeDtypeStruct((R, out_features), out_dtype),
        grid=grid,
        in_specs=in_specs,
        # Unpadded output block (last dim == full array dim): avoids the padded
        # f32 writeback and the wrapper-side slice pass.
        out_specs=pl.BlockSpec((tm, out_features), lambda i: (i, 0)),
        compiler_params=pltpu.CompilerParams(
            dimension_semantics=("parallel",),        # megacore sharding on v7x
            vmem_limit_bytes=vmem_limit_bytes),
        cost_estimate=cost,
    )(*args)

    # Rearrange 'b n (i f) -> b n i f' with f = num_outputs.
    return out.reshape(B, N, out_features // num_outputs, num_outputs)


_ATTEMPT_CACHE = {}


def fc_trunk_forward(x, weights, biases, *, out_features, num_outputs,
                     gelu_approximate=False, out_dtype=jnp.float32):
    """x: (B, N, input_size) f32. weights/biases: prepared (padded) params.
    Returns (B, N, out_features // num_outputs, num_outputs)."""
    cfg = _tpu_config()
    R = x.shape[0] * x.shape[1]
    in_p = weights[0].shape[0]
    tm = _choose_row_tile(R, cfg["max_row_tile"])
    vmem_limit = _vmem_budget(weights, biases, tm, in_p, out_features,
                              np.dtype(out_dtype).itemsize, cfg["vmem_cap"])
    # TODO(synk): stream weights via pltpu.emit_pipeline when the resident
    # weight set exceeds the per-generation VMEM cap (e.g. hidden ~4k on v7x).

    base = dict(out_features=out_features, num_outputs=num_outputs,
                gelu_approximate=gelu_approximate, out_dtype=out_dtype,
                row_tile=tm, vmem_limit_bytes=vmem_limit)
    attempts = []
    for a in ((True, cfg["hidden_act_bf16"]),    # preferred
              (False, cfg["hidden_act_bf16"]),   # no single-buffered weights
              (False, False)):                   # plus f32 hidden activations
        if a not in attempts:
            attempts.append(a)
    if gelu_approximate in _ATTEMPT_CACHE:
        attempts = [_ATTEMPT_CACHE[gelu_approximate]]

    last_err = None
    for sbw, hbf16 in attempts:
        try:
            out = _fc_trunk_pallas(x, weights, biases,
                                   single_buffer_weights=sbw,
                                   hidden_act_bf16=hbf16, **base)
            _ATTEMPT_CACHE[gelu_approximate] = (sbw, hbf16)
            return out
        except Exception as err:  # graceful degradation if pl.Buffered(1) or
            last_err = err        # bf16 transcendentals are unsupported on the
            continue              # installed jax/Mosaic version.
    raise last_err


# ---------------------------------------------------------------------------
# References for correctness checking.
# ---------------------------------------------------------------------------
def _reference_forward_f32(x, weights, biases, out_features, num_outputs,
                           gelu_approximate=False):
    B, N, _ = x.shape
    h = x.reshape(B * N, -1)
    for w, b in zip(weights, biases):
        h = _gelu(h @ w + b, gelu_approximate)
    return h.reshape(B, N, out_features // num_outputs, num_outputs)


def _reference_forward_mirror(x, weights_p, biases_p, out_features, num_outputs,
                              gelu_approximate, hidden_act_bf16):
    """Mirrors the kernel's bf16-MXU / f32-accumulate arithmetic."""
    B, N, in_dim = x.shape
    h = x.reshape(B * N, in_dim)
    in_p = weights_p[0].shape[0]
    if in_p != in_dim:
        h = jnp.pad(h, ((0, 0), (0, in_p - in_dim)))
    h = h.astype(jnp.bfloat16)
    n = len(weights_p)
    out = None
    for i, (w, b) in enumerate(zip(weights_p, biases_p)):
        acc = jnp.dot(h, w, preferred_element_type=jnp.float32) + b
        if i < n - 1:
            if hidden_act_bf16:
                h = _gelu(acc.astype(jnp.bfloat16), gelu_approximate)
            else:
                h = _gelu(acc, gelu_approximate).astype(jnp.bfloat16)
        else:
            out = _gelu(acc, gelu_approximate)[:, :out_features]
    return out.reshape(B, N, out_features // num_outputs, num_outputs)


if __name__ == "__main__":
    # Small shapes implied by FCTrunk.forward: x is (batch, seq, input_size).
    batch, seq = 2, 8
    input_size, hidden_size = 64, 32
    output_size, num_outputs = 8, 4
    num_hidden_layers = 2
    out_features = output_size * num_outputs

    key = jax.random.PRNGKey(0)
    key, kx = jax.random.split(key)
    x = jax.random.normal(kx, (batch, seq, input_size), jnp.float32)

    weights, biases = init_fc_trunk_params(
        key, input_size, hidden_size, output_size, num_outputs, num_hidden_layers)
    weights_p, biases_p = prepare_fc_trunk_params(weights, biases)

    cfg = _tpu_config()

    # 1) PyTorch-parity path: exact erf GELU after every linear.
    out = fc_trunk_forward(x, weights_p, biases_p,
                           out_features=out_features, num_outputs=num_outputs,
                           gelu_approximate=False)
    out = jax.block_until_ready(out)
    assert out.shape == (batch, seq, output_size, num_outputs), out.shape

    ref_m = _reference_forward_mirror(x, weights_p, biases_p, out_features,
                                      num_outputs, False, cfg["hidden_act_bf16"])
    err_m = float(jnp.max(jnp.abs(out - ref_m)))
    assert jnp.allclose(out, ref_m, atol=4e-2, rtol=4e-2), err_m

    ref_f32 = _reference_forward_f32(x, weights, biases, out_features, num_outputs)
    err_f = float(jnp.max(jnp.abs(out - ref_f32)))
    assert jnp.allclose(out, ref_f32, atol=8e-2, rtol=8e-2), err_f

    # 2) EUP-routed tanh-approx GELU variant (perf option; small, documented
    #    deviation from nn.GELU()'s exact erf).
    out_a = fc_trunk_forward(x, weights_p, biases_p,
                             out_features=out_features, num_outputs=num_outputs,
                             gelu_approximate=True)
    out_a = jax.block_until_ready(out_a)
    ref_a = _reference_forward_mirror(x, weights_p, biases_p, out_features,
                                      num_outputs, True, cfg["hidden_act_bf16"])
    err_a = float(jnp.max(jnp.abs(out_a - ref_a)))
    assert jnp.allclose(out_a, ref_a, atol=4e-2, rtol=4e-2), err_a

    print("KERNEL_OK")
</pallas_src>

<mosaic_0001>
module attributes {stable_mosaic.version = 11 : i64} {
  func.func @_fc_trunk_kernel(%arg0: i32, %arg1: memref<8x128xf32, #tpu.memory_space<vmem>>, %arg2: memref<128x128xbf16, #tpu.memory_space<vmem>>, %arg3: memref<1x128xf32, #tpu.memory_space<vmem>>, %arg4: memref<128x128xbf16, #tpu.memory_space<vmem>>, %arg5: memref<1x128xf32, #tpu.memory_space<vmem>>, %arg6: memref<128x128xbf16, #tpu.memory_space<vmem>>, %arg7: memref<1x128xf32, #tpu.memory_space<vmem>>, %arg8: memref<8x32xf32, #tpu.memory_space<vmem>>) attributes {dimension_semantics = [#tpu.dimension_semantics<parallel>], iteration_bounds = array<i64: 2>, scalar_prefetch = 0 : i64, scratch_operands = 0 : i64, tpu.core_type = #tpu.core_type<tc>, window_params = [{transform_indices = @transform_0, window_bounds = array<i64: 8, 128>}, {pipeline_mode = #tpu.pipeline_mode<synchronous>, transform_indices = @transform_1, window_bounds = array<i64: 128, 128>}, {pipeline_mode = #tpu.pipeline_mode<synchronous>, transform_indices = @transform_2, window_bounds = array<i64: 1, 128>}, {pipeline_mode = #tpu.pipeline_mode<synchronous>, transform_indices = @transform_3, window_bounds = array<i64: 128, 128>}, {pipeline_mode = #tpu.pipeline_mode<synchronous>, transform_indices = @transform_4, window_bounds = array<i64: 1, 128>}, {pipeline_mode = #tpu.pipeline_mode<synchronous>, transform_indices = @transform_5, window_bounds = array<i64: 128, 128>}, {pipeline_mode = #tpu.pipeline_mode<synchronous>, transform_indices = @transform_6, window_bounds = array<i64: 1, 128>}, {transform_indices = @transform_7, window_bounds = array<i64: 8, 32>}]} {
    %c0 = arith.constant 0 : index
    %c0_0 = arith.constant 0 : index
    %0 = vector.load %arg1[%c0, %c0_0] : memref<8x128xf32, #tpu.memory_space<vmem>>, vector<8x128xf32>
    %1 = arith.truncf %0 : vector<8x128xf32> to vector<8x128xbf16>
    %c0_1 = arith.constant 0 : index
    %c0_2 = arith.constant 0 : index
    %2 = vector.load %arg2[%c0_1, %c0_2] : memref<128x128xbf16, #tpu.memory_space<vmem>>, vector<128x128xbf16>
    %c0_3 = arith.constant 0 : index
    %c0_4 = arith.constant 0 : index
    %3 = vector.load %arg3[%c0_3, %c0_4] : memref<1x128xf32, #tpu.memory_space<vmem>>, vector<1x128xf32>
    %cst = arith.constant dense<0.000000e+00> : vector<8x128xf32>
    %4 = tpu.matmul %1, %2, %cst {dimension_numbers = #tpu.dot_dimension_numbers<[1], [0], [0], [1], [0, 0, 1, 1], [], []>} : vector<8x128xbf16>, vector<128x128xbf16>, vector<8x128xf32> -> vector<8x128xf32>
    %5 = vector.broadcast %3 : vector<1x128xf32> to vector<8x128xf32>
    %6 = arith.addf %4, %5 : vector<8x128xf32>
    %cst_5 = arith.constant 5.000000e-01 : f32
    %7 = vector.broadcast %cst_5 : f32 to vector<8x128xf32>
    %8 = arith.mulf %7, %6 : vector<8x128xf32>
    %cst_6 = arith.constant 0.707106769 : f32
    %9 = vector.broadcast %cst_6 : f32 to vector<8x128xf32>
    %10 = arith.mulf %6, %9 : vector<8x128xf32>
    %11 = math.erf %10 : vector<8x128xf32>
    %cst_7 = arith.constant 1.000000e+00 : f32
    %12 = vector.broadcast %cst_7 : f32 to vector<8x128xf32>
    %13 = arith.addf %12, %11 : vector<8x128xf32>
    %14 = arith.mulf %8, %13 : vector<8x128xf32>
    %15 = arith.truncf %14 : vector<8x128xf32> to vector<8x128xbf16>
    %c0_8 = arith.constant 0 : index
    %c0_9 = arith.constant 0 : index
    %16 = vector.load %arg4[%c0_8, %c0_9] : memref<128x128xbf16, #tpu.memory_space<vmem>>, vector<128x128xbf16>
    %c0_10 = arith.constant 0 : index
    %c0_11 = arith.constant 0 : index
    %17 = vector.load %arg5[%c0_10, %c0_11] : memref<1x128xf32, #tpu.memory_space<vmem>>, vector<1x128xf32>
    %cst_12 = arith.constant dense<0.000000e+00> : vector<8x128xf32>
    %18 = tpu.matmul %15, %16, %cst_12 {dimension_numbers = #tpu.dot_dimension_numbers<[1], [0], [0], [1], [0, 0, 1, 1], [], []>} : vector<8x128xbf16>, vector<128x128xbf16>, vector<8x128xf32> -> vector<8x128xf32>
    %19 = vector.broadcast %17 : vector<1x128xf32> to vector<8x128xf32>
    %20 = arith.addf %18, %19 : vector<8x128xf32>
    %cst_13 = arith.constant 5.000000e-01 : f32
    %21 = vector.broadcast %cst_13 : f32 to vector<8x128xf32>
    %22 = arith.mulf %21, %20 : vector<8x128xf32>
    %cst_14 = arith.constant 0.707106769 : f32
    %23 = vector.broadcast %cst_14 : f32 to vector<8x128xf32>
    %24 = arith.mulf %20, %23 : vector<8x128xf32>
    %25 = math.erf %24 : vector<8x128xf32>
    %cst_15 = arith.constant 1.000000e+00 : f32
    %26 = vector.broadcast %cst_15 : f32 to vector<8x128xf32>
    %27 = arith.addf %26, %25 : vector<8x128xf32>
    %28 = arith.mulf %22, %27 : vector<8x128xf32>
    %29 = arith.truncf %28 : vector<8x128xf32> to vector<8x128xbf16>
    %c0_16 = arith.constant 0 : index
    %c0_17 = arith.constant 0 : index
    %30 = vector.load %arg6[%c0_16, %c0_17] : memref<128x128xbf16, #tpu.memory_space<vmem>>, vector<128x128xbf16>
    %c0_18 = arith.constant 0 : index
    %c0_19 = arith.constant 0 : index
    %31 = vector.load %arg7[%c0_18, %c0_19] : memref<1x128xf32, #tpu.memory_space<vmem>>, vector<1x128xf32>
    %cst_20 = arith.constant dense<0.000000e+00> : vector<8x128xf32>
    %32 = tpu.matmul %29, %30, %cst_20 {dimension_numbers = #tpu.dot_dimension_numbers<[1], [0], [0], [1], [0, 0, 1, 1], [], []>} : vector<8x128xbf16>, vector<128x128xbf16>, vector<8x128xf32> -> vector<8x128xf32>
    %33 = vector.broadcast %31 : vector<1x128xf32> to vector<8x128xf32>
    %34 = arith.addf %32, %33 : vector<8x128xf32>
    %cst_21 = arith.constant 5.000000e-01 : f32
    %35 = vector.broadcast %cst_21 : f32 to vector<8x128xf32>
    %36 = arith.mulf %35, %34 : vector<8x128xf32>
    %cst_22 = arith.constant 0.707106769 : f32
    %37 = vector.broadcast %cst_22 : f32 to vector<8x128xf32>
    %38 = arith.mulf %34, %37 : vector<8x128xf32>
    %39 = math.erf %38 : vector<8x128xf32>
    %cst_23 = arith.constant 1.000000e+00 : f32
    %40 = vector.broadcast %cst_23 : f32 to vector<8x128xf32>
    %41 = arith.addf %40, %39 : vector<8x128xf32>
    %42 = arith.mulf %36, %41 : vector<8x128xf32>
    %43 = vector.extract_strided_slice %42 {offsets = [0, 0], sizes = [8, 32], strides = [1, 1]} : vector<8x128xf32> to vector<8x32xf32>
    %c0_24 = arith.constant 0 : index
    %c0_25 = arith.constant 0 : index
    %44 = vector.load %arg8[%c0_24, %c0_25] : memref<8x32xf32, #tpu.memory_space<vmem>>, vector<8x32xf32>
    tpu.vector_store %arg8[%c0_24, %c0_25], %43 {strides = array<i32>} : memref<8x32xf32, #tpu.memory_space<vmem>>, vector<8x32xf32>,
    return
  }
  func.func @transform_0(%arg0: i32) -> (i32, i32) {
    %c0_i32 = arith.constant 0 : i32
    %c0_i32_0 = arith.constant 0 : i32
    return %arg0, %c0_i32 : i32, i32
  }
  func.func @transform_1(%arg0: i32) -> (i32, i32) {
    %c0_i32 = arith.constant 0 : i32
    %c0_i32_0 = arith.constant 0 : i32
    %c0_i32_1 = arith.constant 0 : i32
    return %c0_i32, %c0_i32_0 : i32, i32
  }
  func.func @transform_2(%arg0: i32) -> (i32, i32) {
    %c0_i32 = arith.constant 0 : i32
    %c0_i32_0 = arith.constant 0 : i32
    %c0_i32_1 = arith.constant 0 : i32
    return %c0_i32, %c0_i32_0 : i32, i32
  }
  func.func @transform_3(%arg0: i32) -> (i32, i32) {
    %c0_i32 = arith.constant 0 : i32
    %c0_i32_0 = arith.constant 0 : i32
    %c0_i32_1 = arith.constant 0 : i32
    return %c0_i32, %c0_i32_0 : i32, i32
  }
  func.func @transform_4(%arg0: i32) -> (i32, i32) {
    %c0_i32 = arith.constant 0 : i32
    %c0_i32_0 = arith.constant 0 : i32
    %c0_i32_1 = arith.constant 0 : i32
    return %c0_i32, %c0_i32_0 : i32, i32
  }
  func.func @transform_5(%arg0: i32) -> (i32, i32) {
    %c0_i32 = arith.constant 0 : i32
    %c0_i32_0 = arith.constant 0 : i32
    %c0_i32_1 = arith.constant 0 : i32
    return %c0_i32, %c0_i32_0 : i32, i32
  }
  func.func @transform_6(%arg0: i32) -> (i32, i32) {
    %c0_i32 = arith.constant 0 : i32
    %c0_i32_0 = arith.constant 0 : i32
    %c0_i32_1 = arith.constant 0 : i32
    return %c0_i32, %c0_i32_0 : i32, i32
  }
  func.func @transform_7(%arg0: i32) -> (i32, i32) {
    %c0_i32 = arith.constant 0 : i32
    %c0_i32_0 = arith.constant 0 : i32
    return %arg0, %c0_i32 : i32, i32
  }
}

module attributes {stable_mosaic.version = 11 : i64} {
  func.func @_fc_trunk_kernel(%arg0: i32, %arg1: memref<8x128xf32, #tpu.memory_space<vmem>>, %arg2: memref<128x128xbf16, #tpu.memory_space<vmem>>, %arg3: memref<1x128xf32, #tpu.memory_space<vmem>>, %arg4: memref<128x128xbf16, #tpu.memory_space<vmem>>, %arg5: memref<1x128xf32, #tpu.memory_space<vmem>>, %arg6: memref<128x128xbf16, #tpu.memory_space<vmem>>, %arg7: memref<1x128xf32, #tpu.memory_space<vmem>>, %arg8: memref<8x32xf32, #tpu.memory_space<vmem>>) attributes {dimension_semantics = [#tpu.dimension_semantics<parallel>], iteration_bounds = array<i64: 2>, scalar_prefetch = 0 : i64, scratch_operands = 0 : i64, tpu.core_type = #tpu.core_type<tc>, window_params = [{transform_indices = @transform_0, window_bounds = array<i64: 8, 128>}, {pipeline_mode = #tpu.pipeline_mode<synchronous>, transform_indices = @transform_1, window_bounds = array<i64: 128, 128>}, {pipeline_mode = #tpu.pipeline_mode<synchronous>, transform_indices = @transform_2, window_bounds = array<i64: 1, 128>}, {pipeline_mode = #tpu.pipeline_mode<synchronous>, transform_indices = @transform_3, window_bounds = array<i64: 128, 128>}, {pipeline_mode = #tpu.pipeline_mode<synchronous>, transform_indices = @transform_4, window_bounds = array<i64: 1, 128>}, {pipeline_mode = #tpu.pipeline_mode<synchronous>, transform_indices = @transform_5, window_bounds = array<i64: 128, 128>}, {pipeline_mode = #tpu.pipeline_mode<synchronous>, transform_indices = @transform_6, window_bounds = array<i64: 1, 128>}, {transform_indices = @transform_7, window_bounds = array<i64: 8, 32>}]} {
    %c0 = arith.constant 0 : index
    %c0_0 = arith.constant 0 : index
    %0 = vector.load %arg1[%c0, %c0_0] : memref<8x128xf32, #tpu.memory_space<vmem>>, vector<8x128xf32>
    %1 = arith.truncf %0 : vector<8x128xf32> to vector<8x128xbf16>
    %c0_1 = arith.constant 0 : index
    %c0_2 = arith.constant 0 : index
    %2 = vector.load %arg2[%c0_1, %c0_2] : memref<128x128xbf16, #tpu.memory_space<vmem>>, vector<128x128xbf16>
    %c0_3 = arith.constant 0 : index
    %c0_4 = arith.constant 0 : index
    %3 = vector.load %arg3[%c0_3, %c0_4] : memref<1x128xf32, #tpu.memory_space<vmem>>, vector<1x128xf32>
    %cst = arith.constant dense<0.000000e+00> : vector<8x128xf32>
    %4 = tpu.matmul %1, %2, %cst {dimension_numbers = #tpu.dot_dimension_numbers<[1], [0], [0], [1], [0, 0, 1, 1], [], []>} : vector<8x128xbf16>, vector<128x128xbf16>, vector<8x128xf32> -> vector<8x128xf32>
    %5 = vector.broadcast %3 : vector<1x128xf32> to vector<8x128xf32>
    %6 = arith.addf %4, %5 : vector<8x128xf32>
    %cst_5 = arith.constant 5.000000e-01 : f32
    %7 = vector.broadcast %cst_5 : f32 to vector<8x128xf32>
    %8 = arith.mulf %7, %6 : vector<8x128xf32>
    %cst_6 = arith.constant 0.707106769 : f32
    %9 = vector.broadcast %cst_6 : f32 to vector<8x128xf32>
    %10 = arith.mulf %6, %9 : vector<8x128xf32>
    %11 = math.erf %10 : vector<8x128xf32>
    %cst_7 = arith.constant 1.000000e+00 : f32
    %12 = vector.broadcast %cst_7 : f32 to vector<8x128xf32>
    %13 = arith.addf %12, %11 : vector<8x128xf32>
    %14 = arith.mulf %8, %13 : vector<8x128xf32>
    %15 = arith.truncf %14 : vector<8x128xf32> to vector<8x128xbf16>
    %c0_8 = arith.constant 0 : index
    %c0_9 = arith.constant 0 : index
    %16 = vector.load %arg4[%c0_8, %c0_9] : memref<128x128xbf16, #tpu.memory_space<vmem>>, vector<128x128xbf16>
    %c0_10 = arith.constant 0 : index
    %c0_11 = arith.constant 0 : index
    %17 = vector.load %arg5[%c0_10, %c0_11] : memref<1x128xf32, #tpu.memory_space<vmem>>, vector<1x128xf32>
    %cst_12 = arith.constant dense<0.000000e+00> : vector<8x128xf32>
    %18 = tpu.matmul %15, %16, %cst_12 {dimension_numbers = #tpu.dot_dimension_numbers<[1], [0], [0], [1], [0, 0, 1, 1], [], []>} : vector<8x128xbf16>, vector<128x128xbf16>, vector<8x128xf32> -> vector<8x128xf32>
    %19 = vector.broadcast %17 : vector<1x128xf32> to vector<8x128xf32>
    %20 = arith.addf %18, %19 : vector<8x128xf32>
    %cst_13 = arith.constant 5.000000e-01 : f32
    %21 = vector.broadcast %cst_13 : f32 to vector<8x128xf32>
    %22 = arith.mulf %21, %20 : vector<8x128xf32>
    %cst_14 = arith.constant 0.707106769 : f32
    %23 = vector.broadcast %cst_14 : f32 to vector<8x128xf32>
    %24 = arith.mulf %20, %23 : vector<8x128xf32>
    %25 = math.erf %24 : vector<8x128xf32>
    %cst_15 = arith.constant 1.000000e+00 : f32
    %26 = vector.broadcast %cst_15 : f32 to vector<8x128xf32>
    %27 = arith.addf %26, %25 : vector<8x128xf32>
    %28 = arith.mulf %22, %27 : vector<8x128xf32>
    %29 = arith.truncf %28 : vector<8x128xf32> to vector<8x128xbf16>
    %c0_16 = arith.constant 0 : index
    %c0_17 = arith.constant 0 : index
    %30 = vector.load %arg6[%c0_16, %c0_17] : memref<128x128xbf16, #tpu.memory_space<vmem>>, vector<128x128xbf16>
    %c0_18 = arith.constant 0 : index
    %c0_19 = arith.constant 0 : index
    %31 = vector.load %arg7[%c0_18, %c0_19] : memref<1x128xf32, #tpu.memory_space<vmem>>, vector<1x128xf32>
    %cst_20 = arith.constant dense<0.000000e+00> : vector<8x128xf32>
    %32 = tpu.matmul %29, %30, %cst_20 {dimension_numbers = #tpu.dot_dimension_numbers<[1], [0], [0], [1], [0, 0, 1, 1], [], []>} : vector<8x128xbf16>, vector<128x128xbf16>, vector<8x128xf32> -> vector<8x128xf32>
    %33 = vector.broadcast %31 : vector<1x128xf32> to vector<8x128xf32>
    %34 = arith.addf %32, %33 : vector<8x128xf32>
    %cst_21 = arith.constant 5.000000e-01 : f32
    %35 = vector.broadcast %cst_21 : f32 to vector<8x128xf32>
    %36 = arith.mulf %35, %34 : vector<8x128xf32>
    %cst_22 = arith.constant 0.707106769 : f32
    %37 = vector.broadcast %cst_22 : f32 to vector<8x128xf32>
    %38 = arith.mulf %34, %37 : vector<8x128xf32>
    %39 = math.erf %38 : vector<8x128xf32>
    %cst_23 = arith.constant 1.000000e+00 : f32
    %40 = vector.broadcast %cst_23 : f32 to vector<8x128xf32>
    %41 = arith.addf %40, %39 : vector<8x128xf32>
    %42 = arith.mulf %36, %41 : vector<8x128xf32>
    %43 = vector.extract_strided_slice %42 {offsets = [0, 0], sizes = [8, 32], strides = [1, 1]} : vector<8x128xf32> to vector<8x32xf32>
    %c0_24 = arith.constant 0 : index
    %c0_25 = arith.constant 0 : index
    %44 = vector.load %arg8[%c0_24, %c0_25] : memref<8x32xf32, #tpu.memory_space<vmem>>, vector<8x32xf32>
    tpu.vector_store %arg8[%c0_24, %c0_25], %43 {strides = array<i32>} : memref<8x32xf32, #tpu.memory_space<vmem>>, vector<8x32xf32>,
    return
  }
  func.func @transform_0(%arg0: i32) -> (i32, i32) {
    %c0_i32 = arith.constant 0 : i32
    %c0_i32_0 = arith.constant 0 : i32
    return %arg0, %c0_i32 : i32, i32
  }
  func.func @transform_1(%arg0: i32) -> (i32, i32) {
    %c0_i32 = arith.constant 0 : i32
    %c0_i32_0 = arith.constant 0 : i32
    %c0_i32_1 = arith.constant 0 : i32
    return %c0_i32, %c0_i32_0 : i32, i32
  }
  func.func @transform_2(%arg0: i32) -> (i32, i32) {
    %c0_i32 = arith.constant 0 : i32
    %c0_i32_0 = arith.constant 0 : i32
    %c0_i32_1 = arith.constant 0 : i32
    return %c0_i32, %c0_i32_0 : i32, i32
  }
  func.func @transform_3(%arg0: i32) -> (i32, i32) {
    %c0_i32 = arith.constant 0 : i32
    %c0_i32_0 = arith.constant 0 : i32
    %c0_i32_1 = arith.constant 0 : i32
    return %c0_i32, %c0_i32_0 : i32, i32
  }
  func.func @transform_4(%arg0: i32) -> (i32, i32) {
    %c0_i32 = arith.constant 0 : i32
    %c0_i32_0 = arith.constant 0 : i32
    %c0_i32_1 = arith.constant 0 : i32
    return %c0_i32, %c0_i32_0 : i32, i32
  }
  func.func @transform_5(%arg0: i32) -> (i32, i32) {
    %c0_i32 = arith.constant 0 : i32
    %c0_i32_0 = arith.constant 0 : i32
    %c0_i32_1 = arith.constant 0 : i32
    return %c0_i32, %c0_i32_0 : i32, i32
  }
  func.func @transform_6(%arg0: i32) -> (i32, i32) {
    %c0_i32 = arith.constant 0 : i32
    %c0_i32_0 = arith.constant 0 : i32
    %c0_i32_1 = arith.constant 0 : i32
    return %c0_i32, %c0_i32_0 : i32, i32
  }
  func.func @transform_7(%arg0: i32) -> (i32, i32) {
    %c0_i32 = arith.constant 0 : i32
    %c0_i32_0 = arith.constant 0 : i32
    return %arg0, %c0_i32 : i32, i32
  }
}

</mosaic_0001>

<llo_original>
// kernel: _fc_trunk_pallas.1
$region0: #{_fc_trunk_pallas.1}
  #allocation0 [shape = 'u32[]', space=smem, size = 0x4, offset = 0x4, fixed_abs, tag = 'smem constant byte address 0x4 - core index']
  #allocation1 [shape = 'u32[144,128]{1,0:T(1,128)}', space=vmem, size = 0x12000, scoped, tag = 'internal scratch']
  %s0 = inlined_call_operand.vmem [shape: f32[16,128], index: 0, kind: input, shape index: {}]
  %s1 = inlined_call_operand.hbm [shape: bf16[128,128], index: 1, kind: input, shape index: {}]
  %s2 = inlined_call_operand.vmem [shape: f32[1,128], index: 2, kind: input, shape index: {}]
  %s3 = inlined_call_operand.hbm [shape: bf16[128,128], index: 3, kind: input, shape index: {}]
  %s4 = inlined_call_operand.vmem [shape: f32[1,128], index: 4, kind: input, shape index: {}]
  %s5 = inlined_call_operand.hbm [shape: bf16[128,128], index: 5, kind: input, shape index: {}]
  %s6 = inlined_call_operand.vmem [shape: f32[1,128], index: 6, kind: input, shape index: {}]
  %s7 = inlined_call_operand.vmem [shape: f32[16,32], index: 7, kind: output, shape index: {}]
  %s8 = sld [smem:[#allocation0]]
  $region73: #{_fc_trunk_pallas.1} parent=0
    _
  %s10 = ssub.s32 1, %s8
  %s11 = scalar_select 0, %s10, %s8
  $region1: #{_fc_trunk_pallas.1} parent=0
    #allocation2 [shape = 'u8[32768]{0}', space=vmem, size = 0x8000, scoped, tag = 'input window, operand 1, single buffered']
    #allocation3 [shape = 's32[2]{0}', space=sflag, size = 0x8, scoped, tag = 'scoped memory for _fc_trunk_pallas.1']
    #allocation4 [shape = 'u8[32768]{0}', space=vmem, size = 0x8000, scoped, tag = 'input window, operand 3, single buffered']
    #allocation5 [shape = 's32[1]{0}', space=sflag, size = 0x4, scoped, tag = 'scoped memory for _fc_trunk_pallas.1']
    #allocation6 [shape = 'u8[32768]{0}', space=vmem, size = 0x8000, scoped, tag = 'input window, operand 5, single buffered']
    %12 = vsyncpa [#allocation3], 0
    %13 = vsyncpa [#allocation5], 0
    loop: start=0, step=1, limit=4
    $region2: #{_fc_trunk_pallas.1} parent=1 // loop_pre_header
      _
    $region3: #{_fc_trunk_pallas.1} parent=1 // loop_header
      %s15 = sphi 0, %s19
      %p16 = scmp.ge.s32.totalorder %s15, 4
      %s25 = sphi 0, %s27
      %s28 = sphi 0, %s25
      %s29 = sphi 0, %s28
      %s45 = sphi 0, %s29
      %s49 = sphi 0, %s49
      %s51 = sphi 0, %s49
      %s52 = sphi 0, %s51
      %s66 = sphi 0, %s52
      %s70 = sphi 0, %s70
      %s72 = sphi 0, %s70
      %s73 = sphi 0, %s72
      %s87 = sphi 0, %s73
      %s91 = sphi 0, %s91
      %s93 = sphi 0, %s91
      %s94 = sphi 0, %s93
      %s108 = sphi 0, %s94
      %s112 = sphi 0, %s112
      %s114 = sphi 0, %s112
      %s115 = sphi 0, %s114
      %s129 = sphi 0, %s115
      %s133 = sphi 0, %s133
      %s135 = sphi 0, %s133
      %s136 = sphi 0, %s135
      %s150 = sphi 0, %s136
      %s154 = sphi 0, %s154
      %s156 = sphi 0, %s154
      %s157 = sphi 0, %s156
      %s171 = sphi 0, %s157
      %s177 = sphi 0, %s179
      %s180 = sphi 0, %s177
      %s181 = sphi 0, %s180
      %s197 = sphi 0, %s181
    $region4: #{_fc_trunk_pallas.1} parent=1 // loop_header_branch
      %18 = sbr.rel (%p16) target = $region8
    $region5: #{_fc_trunk_pallas.1} parent=1 // loop_body
      %s20 = ssub.s32 %s15, 1
      %s21 = ssub.s32 %s15, 2
      %s22 = sadd.s32 %s15, 1
      %s23 = ssub.s32 %s15, %s22
      %p24 = scmp.eq.s32.totalorder %s23, 0
      %s26 = sadd.s32 %s25, 1
      %s27 = scalar_select %p24, %s25, %s26
      %p30 = pneg %p24
      %p31 = scmp.eq.s32.totalorder %s15, 1
      %p32 = por %p30, %p31
      %p33 = scmp.ne.s32.totalorder %s25, %s28
      %p34 = scmp.eq.s32.totalorder %s15, 0
      %p35 = por %p33, %p34
      %p36 = scmp.ne.s32.totalorder %s25, %s28
      %p37 = scmp.eq.s32.totalorder %s20, 1
      %p38 = por %p36, %p37
      %p39 = scmp.ne.s32.totalorder %s28, %s29
      %p40 = scmp.eq.s32.totalorder %s20, 0
      %p41 = por %p39, %p40
      %p42 = scmp.ne.s32.totalorder %s28, %s29
      %p43 = scmp.eq.s32.totalorder %s21, 1
      %p44 = por %p42, %p43
      %p46 = scmp.ne.s32.totalorder %s29, %s45
      %p47 = scmp.eq.s32.totalorder %s21, 0
      %p48 = por %p46, %p47
      %s50 = sadd.s32 %s49, 1
      %p53 = scmp.eq.s32.totalorder %s15, 1
      %p54 = scmp.ne.s32.totalorder %s49, %s51
      %p55 = scmp.eq.s32.totalorder %s15, 0
      %p56 = por %p54, %p55
      %p57 = scmp.ne.s32.totalorder %s49, %s51
      %p58 = scmp.eq.s32.totalorder %s20, 1
      %p59 = por %p57, %p58
      %p60 = scmp.ne.s32.totalorder %s51, %s52
      %p61 = scmp.eq.s32.totalorder %s20, 0
      %p62 = por %p60, %p61
      %p63 = scmp.ne.s32.totalorder %s51, %s52
      %p64 = scmp.eq.s32.totalorder %s21, 1
      %p65 = por %p63, %p64
      %p67 = scmp.ne.s32.totalorder %s52, %s66
      %p68 = scmp.eq.s32.totalorder %s21, 0
      %p69 = por %p67, %p68
      %s71 = sadd.s32 %s70, 1
      %p74 = scmp.eq.s32.totalorder %s15, 1
      %p75 = scmp.ne.s32.totalorder %s70, %s72
      %p76 = scmp.eq.s32.totalorder %s15, 0
      %p77 = por %p75, %p76
      %p78 = scmp.ne.s32.totalorder %s70, %s72
      %p79 = scmp.eq.s32.totalorder %s20, 1
      %p80 = por %p78, %p79
      %p81 = scmp.ne.s32.totalorder %s72, %s73
      %p82 = scmp.eq.s32.totalorder %s20, 0
      %p83 = por %p81, %p82
      %p84 = scmp.ne.s32.totalorder %s72, %s73
      %p85 = scmp.eq.s32.totalorder %s21, 1
      %p86 = por %p84, %p85
      %p88 = scmp.ne.s32.totalorder %s73, %s87
      %p89 = scmp.eq.s32.totalorder %s21, 0
      %p90 = por %p88, %p89
      %s92 = sadd.s32 %s91, 1
      %p95 = scmp.eq.s32.totalorder %s15, 1
      %p96 = scmp.ne.s32.totalorder %s91, %s93
      %p97 = scmp.eq.s32.totalorder %s15, 0
      %p98 = por %p96, %p97
      %p99 = scmp.ne.s32.totalorder %s91, %s93
      %p100 = scmp.eq.s32.totalorder %s20, 1
      %p101 = por %p99, %p100
      %p102 = scmp.ne.s32.totalorder %s93, %s94
      %p103 = scmp.eq.s32.totalorder %s20, 0
      %p104 = por %p102, %p103
      %p105 = scmp.ne.s32.totalorder %s93, %s94
      %p106 = scmp.eq.s32.totalorder %s21, 1
      %p107 = por %p105, %p106
      %p109 = scmp.ne.s32.totalorder %s94, %s108
      %p110 = scmp.eq.s32.totalorder %s21, 0
      %p111 = por %p109, %p110
      %s113 = sadd.s32 %s112, 1
      %p116 = scmp.eq.s32.totalorder %s15, 1
      %p117 = scmp.ne.s32.totalorder %s112, %s114
      %p118 = scmp.eq.s32.totalorder %s15, 0
      %p119 = por %p117, %p118
      %p120 = scmp.ne.s32.totalorder %s112, %s114
      %p121 = scmp.eq.s32.totalorder %s20, 1
      %p122 = por %p120, %p121
      %p123 = scmp.ne.s32.totalorder %s114, %s115
      %p124 = scmp.eq.s32.totalorder %s20, 0
      %p125 = por %p123, %p124
      %p126 = scmp.ne.s32.totalorder %s114, %s115
      %p127 = scmp.eq.s32.totalorder %s21, 1
      %p128 = por %p126, %p127
      %p130 = scmp.ne.s32.totalorder %s115, %s129
      %p131 = scmp.eq.s32.totalorder %s21, 0
      %p132 = por %p130, %p131
      %s134 = sadd.s32 %s133, 1
      %p137 = scmp.eq.s32.totalorder %s15, 1
      %p138 = scmp.ne.s32.totalorder %s133, %s135
      %p139 = scmp.eq.s32.totalorder %s15, 0
      %p140 = por %p138, %p139
      %p141 = scmp.ne.s32.totalorder %s133, %s135
      %p142 = scmp.eq.s32.totalorder %s20, 1
      %p143 = por %p141, %p142
      %p144 = scmp.ne.s32.totalorder %s135, %s136
      %p145 = scmp.eq.s32.totalorder %s20, 0
      %p146 = por %p144, %p145
      %p147 = scmp.ne.s32.totalorder %s135, %s136
      %p148 = scmp.eq.s32.totalorder %s21, 1
      %p149 = por %p147, %p148
      %p151 = scmp.ne.s32.totalorder %s136, %s150
      %p152 = scmp.eq.s32.totalorder %s21, 0
      %p153 = por %p151, %p152
      %s155 = sadd.s32 %s154, 1
      %p158 = scmp.eq.s32.totalorder %s15, 1
      %p159 = scmp.ne.s32.totalorder %s154, %s156
      %p160 = scmp.eq.s32.totalorder %s15, 0
      %p161 = por %p159, %p160
      %p162 = scmp.ne.s32.totalorder %s154, %s156
      %p163 = scmp.eq.s32.totalorder %s20, 1
      %p164 = por %p162, %p163
      %p165 = scmp.ne.s32.totalorder %s156, %s157
      %p166 = scmp.eq.s32.totalorder %s20, 0
      %p167 = por %p165, %p166
      %p168 = scmp.ne.s32.totalorder %s156, %s157
      %p169 = scmp.eq.s32.totalorder %s21, 1
      %p170 = por %p168, %p169
      %p172 = scmp.ne.s32.totalorder %s157, %s171
      %p173 = scmp.eq.s32.totalorder %s21, 0
      %p174 = por %p172, %p173
      %s175 = ssub.s32 %s15, %s22
      %p176 = scmp.eq.s32.totalorder %s175, 0
      %s178 = sadd.s32 %s177, 1
      %s179 = scalar_select %p176, %s177, %s178
      %p182 = pneg %p176
      %p183 = scmp.eq.s32.totalorder %s15, 1
      %p184 = por %p182, %p183
      %p185 = scmp.ne.s32.totalorder %s177, %s180
      %p186 = scmp.eq.s32.totalorder %s15, 0
      %p187 = por %p185, %p186
      %p188 = scmp.ne.s32.totalorder %s177, %s180
      %p189 = scmp.eq.s32.totalorder %s20, 1
      %p190 = por %p188, %p189
      %p191 = scmp.ne.s32.totalorder %s180, %s181
      %p192 = scmp.eq.s32.totalorder %s20, 0
      %p193 = por %p191, %p192
      %p194 = scmp.ne.s32.totalorder %s180, %s181
      %p195 = scmp.eq.s32.totalorder %s21, 1
      %p196 = por %p194, %p195
      %p198 = scmp.ne.s32.totalorder %s181, %s197
      %p199 = scmp.eq.s32.totalorder %s21, 0
      %p200 = por %p198, %p199
      %p201 = scmp.le.s32.totalorder 1, %s15
      %p202 = scmp.lt.s32.totalorder %s15, 3
      %p203 = pnand %p201, %p202
      %p204 = pneg %p203
      // Predicated region
      $region9: #{_fc_trunk_pallas.1} parent=5 // pred_check
        _
      $region10: #{_fc_trunk_pallas.1} parent=5 // pred_check_branch
        %206 = sbr.rel (%p203) target = $region12
      $region11: #{_fc_trunk_pallas.1} parent=5 // pred_region
        %s207 = ssub.s32 %s15, 1
        // Predicated region
        $region13: #{_fc_trunk_pallas.1} parent=11 // pred_check
          %p208 = pneg %p62
        $region14: #{_fc_trunk_pallas.1} parent=11 // pred_check_branch
          %210 = sbr.rel (%p208) target = $region16
        $region15: #{_fc_trunk_pallas.1} parent=11 // pred_region
          %s212 = ssub.s32 1024, 1024
          %213 = vsyncadd [#allocation3], %s212
          %s214 = sshll.u32 [#allocation2], 4
          %s215 = int_to_ptr.vmem [resolvable:$true] %s214
          %220 = dma.hbm_to_vmem [thread:$0]  %s1, 1024, %s215, [#allocation3], 64, 64, 4
        $region16: #{_fc_trunk_pallas.1} parent=11 // pred_fallthru
          _
        // Predicated region
        $region17: #{_fc_trunk_pallas.1} parent=11 // pred_check
          %p221 = pneg %p83
        $region18: #{_fc_trunk_pallas.1} parent=11 // pred_check_branch
          %223 = sbr.rel (%p221) target = $region20
        $region19: #{_fc_trunk_pallas.1} parent=11 // pred_region
          _
        $region20: #{_fc_trunk_pallas.1} parent=11 // pred_fallthru
          _
        // Predicated region
        $region21: #{_fc_trunk_pallas.1} parent=11 // pred_check
          %p224 = pneg %p104
        $region22: #{_fc_trunk_pallas.1} parent=11 // pred_check_branch
          %226 = sbr.rel (%p224) target = $region24
        $region23: #{_fc_trunk_pallas.1} parent=11 // pred_region
          %s228 = ssub.s32 1024, 1024
          %229 = vsyncadd [#allocation5], %s228
          %s230 = sshll.u32 [#allocation4], 4
          %s231 = int_to_ptr.vmem [resolvable:$true] %s230
          %236 = dma.hbm_to_vmem [thread:$0]  %s3, 1024, %s231, [#allocation5], 64, 64, 4
        $region24: #{_fc_trunk_pallas.1} parent=11 // pred_fallthru
          _
        // Predicated region
        $region25: #{_fc_trunk_pallas.1} parent=11 // pred_check
          %p237 = pneg %p125
        $region26: #{_fc_trunk_pallas.1} parent=11 // pred_check_branch
          %239 = sbr.rel (%p237) target = $region28
        $region27: #{_fc_trunk_pallas.1} parent=11 // pred_region
          _
        $region28: #{_fc_trunk_pallas.1} parent=11 // pred_fallthru
          _
        // Predicated region
        $region29: #{_fc_trunk_pallas.1} parent=11 // pred_check
          %p240 = pneg %p146
        $region30: #{_fc_trunk_pallas.1} parent=11 // pred_check_branch
          %242 = sbr.rel (%p240) target = $region32
        $region31: #{_fc_trunk_pallas.1} parent=11 // pred_region
          %s244 = ssub.s32 1024, 1024
          %245 = vsyncadd [#allocation5], %s244
          %s246 = sshll.u32 [#allocation6], 4
          %s247 = int_to_ptr.vmem [resolvable:$true] %s246
          %252 = dma.hbm_to_vmem [thread:$0]  %s5, 1024, %s247, [#allocation5], 64, 64, 4
        $region32: #{_fc_trunk_pallas.1} parent=11 // pred_fallthru
          _
        // Predicated region
        $region33: #{_fc_trunk_pallas.1} parent=11 // pred_check
          %p253 = pneg %p167
        $region34: #{_fc_trunk_pallas.1} parent=11 // pred_check_branch
          %255 = sbr.rel (%p253) target = $region36
        $region35: #{_fc_trunk_pallas.1} parent=11 // pred_region
          _
        $region36: #{_fc_trunk_pallas.1} parent=11 // pred_fallthru
          _
      $region12: #{_fc_trunk_pallas.1} parent=5 // pred_fallthru
        _
      %p256 = scmp.lt.s32.totalorder %s15, 2
      // Predicated region
      $region37: #{_fc_trunk_pallas.1} parent=5 // pred_check
        %p257 = pneg %p256
      $region38: #{_fc_trunk_pallas.1} parent=5 // pred_check_branch
        %259 = sbr.rel (%p257) target = $region40
      $region39: #{_fc_trunk_pallas.1} parent=5 // pred_region
        // Predicated region
        $region41: #{_fc_trunk_pallas.1} parent=39 // pred_check
          %p260 = pneg %p35
        $region42: #{_fc_trunk_pallas.1} parent=39 // pred_check_branch
          %262 = sbr.rel (%p260) target = $region44
        $region43: #{_fc_trunk_pallas.1} parent=39 // pred_region
          %p263 = scmp.lt.s32.totalorder %s15, 1
          %s264 = scalar_select %p263, %s15, 1
          %s265 = smul.addr %s264, 8
          %s266 = scalar_lea.vmem %s0, %s265
        $region44: #{_fc_trunk_pallas.1} parent=39 // pred_fallthru
          _
      $region40: #{_fc_trunk_pallas.1} parent=5 // pred_fallthru
        _
      %p267 = scmp.le.s32.totalorder 1, %s15
      %p268 = scmp.lt.s32.totalorder %s15, 3
      %p269 = pnand %p267, %p268
      %p270 = pneg %p269
      // Predicated region
      $region45: #{_fc_trunk_pallas.1} parent=5 // pred_check
        _
      $region46: #{_fc_trunk_pallas.1} parent=5 // pred_check_branch
        %272 = sbr.rel (%p269) target = $region48
      $region47: #{_fc_trunk_pallas.1} parent=5 // pred_region
        %s273 = ssub.s32 %s15, 1
        // Predicated region
        $region49: #{_fc_trunk_pallas.1} parent=47 // pred_check
          %p274 = pneg %p62
        $region50: #{_fc_trunk_pallas.1} parent=47 // pred_check_branch
          %276 = sbr.rel (%p274) target = $region52
        $region51: #{_fc_trunk_pallas.1} parent=47 // pred_region
          %277 = dma.done [#allocation3], 1024
        $region52: #{_fc_trunk_pallas.1} parent=47 // pred_fallthru
          _
        // Predicated region
        $region53: #{_fc_trunk_pallas.1} parent=47 // pred_check
          %p278 = pneg %p104
        $region54: #{_fc_trunk_pallas.1} parent=47 // pred_check_branch
          %280 = sbr.rel (%p278) target = $region56
        $region55: #{_fc_trunk_pallas.1} parent=47 // pred_region
          %281 = dma.done [#allocation5], 1024
        $region56: #{_fc_trunk_pallas.1} parent=47 // pred_fallthru
          _
        // Predicated region
        $region57: #{_fc_trunk_pallas.1} parent=47 // pred_check
          %p282 = pneg %p146
        $region58: #{_fc_trunk_pallas.1} parent=47 // pred_check_branch
          %284 = sbr.rel (%p282) target = $region60
        $region59: #{_fc_trunk_pallas.1} parent=47 // pred_region
          %285 = dma.done [#allocation5], 1024
        $region60: #{_fc_trunk_pallas.1} parent=47 // pred_fallthru
          _
        %p286 = scmp.lt.s32.totalorder %s20, 1
        %s287 = scalar_select %p286, %s20, 1
        %s288 = smul.addr %s287, 8
        %s289 = scalar_lea.vmem %s0, %s288
        %p290 = pneg %p41
        %p291 = pneg %p38
        %p292 = pneg %p62
        %p293 = pneg %p59
        %p294 = pneg %p83
        %p295 = pneg %p80
        %p296 = pneg %p104
        %p297 = pneg %p101
        %p298 = pneg %p125
        %p299 = pneg %p122
        %p300 = pneg %p146
        %p301 = pneg %p143
        %p302 = pneg %p167
        %p303 = pneg %p164
        %p304 = pneg %p193
        %p305 = pneg %p190
        %p306 = scmp.lt.s32.totalorder %s20, 1
        %s307 = scalar_select %p306, %s20, 1
        %s308 = smul.addr %s307, 8
        %s309 = scalar_lea.vmem %s7, %s308
        %p310 = scmp.lt.s32.totalorder %s20, 1
        %s311 = scalar_select %p310, %s20, 1
        %s312 = smul.addr %s311, 8
        %s313 = scalar_lea.vmem %s0, %s312
        %p314 = scmp.lt.s32.totalorder %s20, 1
        %s315 = scalar_select %p314, %s20, 1
        %s316 = smul.addr %s315, 8
        %s317 = scalar_lea.vmem %s7, %s316
        %v319 = vld [vmem:[%s313] sm:$0xff]
        %v320 = vpack.c.bf16 %v319, %v319
        %v321 = vld [vmem:[#allocation2] sm:$0xf]
        %v322 = vld [vmem:[#allocation2 + $0x4] sm:$0xf]
        %v323 = vld [vmem:[#allocation2 + $0x8] sm:$0xf]
        %v324 = vld [vmem:[#allocation2 + $0xc] sm:$0xf]
        %v325 = vld [vmem:[#allocation2 + $0x10] sm:$0xf]
        %v326 = vld [vmem:[#allocation2 + $0x14] sm:$0xf]
        %v327 = vld [vmem:[#allocation2 + $0x18] sm:$0xf]
        %v328 = vld [vmem:[#allocation2 + $0x1c] sm:$0xf]
        %v329 = vld [vmem:[#allocation2 + $0x20] sm:$0xf]
        %v330 = vld [vmem:[#allocation2 + $0x24] sm:$0xf]
        %v331 = vld [vmem:[#allocation2 + $0x28] sm:$0xf]
        %v332 = vld [vmem:[#allocation2 + $0x2c] sm:$0xf]
        %v333 = vld [vmem:[#allocation2 + $0x30] sm:$0xf]
        %v334 = vld [vmem:[#allocation2 + $0x34] sm:$0xf]
        %v335 = vld [vmem:[#allocation2 + $0x38] sm:$0xf]
        %v336 = vld [vmem:[#allocation2 + $0x3c] sm:$0xf]
        %v337 = vld [vmem:[%s2] sm:$0x1]
        %v339 = vlaneseq
        %v340 = vshrl.u32 %v339, 7
        %v341 = vsub.s32 0, %v340
        %v342 = vrot.slane %v337, %v341
        %v360 = vunpack.c.l.b16 %v321
        %v361 = vunpack.c.l.b16 %v322
        %v362 = vunpack.c.l.b16 %v323
        %v363 = vunpack.c.l.b16 %v324
        %v364 = vunpack.c.l.b16 %v325
        %v365 = vunpack.c.l.b16 %v326
        %v366 = vunpack.c.l.b16 %v327
        %v367 = vunpack.c.l.b16 %v328
        %v368 = vunpack.c.l.b16 %v329
        %v369 = vunpack.c.l.b16 %v330
        %v370 = vunpack.c.l.b16 %v331
        %v371 = vunpack.c.l.b16 %v332
        %v372 = vunpack.c.l.b16 %v333
        %v373 = vunpack.c.l.b16 %v334
        %v374 = vunpack.c.l.b16 %v335
        %v375 = vunpack.c.l.b16 %v336
        %v376 = vpack.c.b16 %v361, %v360
        %v377 = vpack.c.b16 %v363, %v362
        %v378 = vpack.c.b16 %v365, %v364
        %v379 = vpack.c.b16 %v367, %v366
        %v380 = vpack.c.b16 %v369, %v368
        %v381 = vpack.c.b16 %v371, %v370
        %v382 = vpack.c.b16 %v373, %v372
        %v383 = vpack.c.b16 %v375, %v374
        %392 = vmatprep.subr.bf16.mxu0 0
        %393 = vmatpush1.bf16.msra.mxu0 %v383
        %394 = vmatprep.subr.bf16.mxu0 0
        %395 = vmatpush1.bf16.msra.mxu0 %v382
        %396 = vmatprep.subr.bf16.mxu0 0
        %397 = vmatpush1.bf16.msra.mxu0 %v381
        %398 = vmatprep.subr.bf16.mxu0 0
        %399 = vmatpush1.bf16.msra.mxu0 %v380
        %400 = vmatprep.subr.bf16.mxu0 0
        %401 = vmatpush1.bf16.msra.mxu0 %v379
        %402 = vmatprep.subr.bf16.mxu0 0
        %403 = vmatpush1.bf16.msra.mxu0 %v378
        %404 = vmatprep.subr.bf16.mxu0 0
        %405 = vmatpush1.bf16.msra.mxu0 %v377
        %406 = vmatprep.subr.bf16.mxu0 0
        %407 = vmatpush1.bf16.msra.mxu0 %v376
        %408 = vmatprep.subr.bf16.mxu0 0
        %409 = vmatpush2.bf16.msra.mxu0 0
        %410 = vmatprep.subr.bf16.mxu0 0
        %411 = vmatpush2.bf16.msra.mxu0 0
        %412 = vmatprep.subr.bf16.mxu0 0
        %413 = vmatpush2.bf16.msra.mxu0 0
        %414 = vmatprep.subr.bf16.mxu0 0
        %415 = vmatpush2.bf16.msra.mxu0 0
        %416 = vmatprep.subr.bf16.mxu0 0
        %417 = vmatpush2.bf16.msra.mxu0 0
        %418 = vmatprep.subr.bf16.mxu0 0
        %419 = vmatpush2.bf16.msra.mxu0 0
        %420 = vmatprep.subr.bf16.mxu0 0
        %421 = vmatpush2.bf16.msra.mxu0 0
        %422 = vmatprep.subr.bf16.mxu0 0
        %423 = vmatpush2.bf16.msra.mxu0 0
        %424 = vmatprep.mubr.bf16.mxu0 0
        %425 = vmatmul.mubr.bf16.gmra.mxu0 %v320
        %v426 = vpop.f32.mrf.mxu0
        %v427 = vadd.f32 %v342, %v426
        %v428 = vpop.f32.mrf.mxu0
        %v429 = vpop.f32.mrf.mxu0
        %v430 = vpop.f32.mrf.mxu0
        %431 = vdwg.mxu0
        %v432 = vmul.f32 %v427, 0.5
        %v433 = vmul.f32 %v427, 0.70710677
        %v434 = verf.f32.pop %v433
        %v435 = vadd.f32 %v434, 1.0
        %v436 = vmul.f32 %v432, %v435
        %v437 = vpack.c.bf16 %v436, %v436
        %v438 = vld [vmem:[#allocation4] sm:$0xf]
        %v439 = vld [vmem:[#allocation4 + $0x4] sm:$0xf]
        %v440 = vld [vmem:[#allocation4 + $0x8] sm:$0xf]
        %v441 = vld [vmem:[#allocation4 + $0xc] sm:$0xf]
        %v442 = vld [vmem:[#allocation4 + $0x10] sm:$0xf]
        %v443 = vld [vmem:[#allocation4 + $0x14] sm:$0xf]
        %v444 = vld [vmem:[#allocation4 + $0x18] sm:$0xf]
        %v445 = vld [vmem:[#allocation4 + $0x1c] sm:$0xf]
        %v446 = vld [vmem:[#allocation4 + $0x20] sm:$0xf]
        %v447 = vld [vmem:[#allocation4 + $0x24] sm:$0xf]
        %v448 = vld [vmem:[#allocation4 + $0x28] sm:$0xf]
        %v449 = vld [vmem:[#allocation4 + $0x2c] sm:$0xf]
        %v450 = vld [vmem:[#allocation4 + $0x30] sm:$0xf]
        %v451 = vld [vmem:[#allocation4 + $0x34] sm:$0xf]
        %v452 = vld [vmem:[#allocation4 + $0x38] sm:$0xf]
        %v453 = vld [vmem:[#allocation4 + $0x3c] sm:$0xf]
        %v454 = vld [vmem:[%s4] sm:$0x1]
        %v456 = vlaneseq
        %v457 = vshrl.u32 %v456, 7
        %v458 = vsub.s32 0, %v457
        %v459 = vrot.slane %v454, %v458
        %v477 = vunpack.c.l.b16 %v438
        %v478 = vunpack.c.l.b16 %v439
        %v479 = vunpack.c.l.b16 %v440
        %v480 = vunpack.c.l.b16 %v441
        %v481 = vunpack.c.l.b16 %v442
        %v482 = vunpack.c.l.b16 %v443
        %v483 = vunpack.c.l.b16 %v444
        %v484 = vunpack.c.l.b16 %v445
        %v485 = vunpack.c.l.b16 %v446
        %v486 = vunpack.c.l.b16 %v447
        %v487 = vunpack.c.l.b16 %v448
        %v488 = vunpack.c.l.b16 %v449
        %v489 = vunpack.c.l.b16 %v450
        %v490 = vunpack.c.l.b16 %v451
        %v491 = vunpack.c.l.b16 %v452
        %v492 = vunpack.c.l.b16 %v453
        %v493 = vpack.c.b16 %v478, %v477
        %v494 = vpack.c.b16 %v480, %v479
        %v495 = vpack.c.b16 %v482, %v481
        %v496 = vpack.c.b16 %v484, %v483
        %v497 = vpack.c.b16 %v486, %v485
        %v498 = vpack.c.b16 %v488, %v487
        %v499 = vpack.c.b16 %v490, %v489
        %v500 = vpack.c.b16 %v492, %v491
        %509 = vmatprep.subr.bf16.mxu0 0
        %510 = vmatpush1.bf16.msra.mxu0 %v500
        %511 = vmatprep.subr.bf16.mxu0 0
        %512 = vmatpush1.bf16.msra.mxu0 %v499
        %513 = vmatprep.subr.bf16.mxu0 0
        %514 = vmatpush1.bf16.msra.mxu0 %v498
        %515 = vmatprep.subr.bf16.mxu0 0
        %516 = vmatpush1.bf16.msra.mxu0 %v497
        %517 = vmatprep.subr.bf16.mxu0 0
        %518 = vmatpush1.bf16.msra.mxu0 %v496
        %519 = vmatprep.subr.bf16.mxu0 0
        %520 = vmatpush1.bf16.msra.mxu0 %v495
        %521 = vmatprep.subr.bf16.mxu0 0
        %522 = vmatpush1.bf16.msra.mxu0 %v494
        %523 = vmatprep.subr.bf16.mxu0 0
        %524 = vmatpush1.bf16.msra.mxu0 %v493
        %525 = vmatprep.subr.bf16.mxu0 0
        %526 = vmatpush2.bf16.msra.mxu0 0
        %527 = vmatprep.subr.bf16.mxu0 0
        %528 = vmatpush2.bf16.msra.mxu0 0
        %529 = vmatprep.subr.bf16.mxu0 0
        %530 = vmatpush2.bf16.msra.mxu0 0
        %531 = vmatprep.subr.bf16.mxu0 0
        %532 = vmatpush2.bf16.msra.mxu0 0
        %533 = vmatprep.subr.bf16.mxu0 0
        %534 = vmatpush2.bf16.msra.mxu0 0
        %535 = vmatprep.subr.bf16.mxu0 0
        %536 = vmatpush2.bf16.msra.mxu0 0
        %537 = vmatprep.subr.bf16.mxu0 0
        %538 = vmatpush2.bf16.msra.mxu0 0
        %539 = vmatprep.subr.bf16.mxu0 0
        %540 = vmatpush2.bf16.msra.mxu0 0
        %541 = vmatprep.mubr.bf16.mxu0 0
        %542 = vmatmul.mubr.bf16.gmra.mxu0 %v437
        %v543 = vpop.f32.mrf.mxu0
        %v544 = vadd.f32 %v459, %v543
        %v545 = vpop.f32.mrf.mxu0
        %v546 = vpop.f32.mrf.mxu0
        %v547 = vpop.f32.mrf.mxu0
        %548 = vdwg.mxu0
        %v549 = vmul.f32 %v544, 0.5
        %v550 = vmul.f32 %v544, 0.70710677
        %v551 = verf.f32.pop %v550
        %v552 = vadd.f32 %v551, 1.0
        %v553 = vmul.f32 %v549, %v552
        %v554 = vpack.c.bf16 %v553, %v553
        %v555 = vld [vmem:[#allocation6] sm:$0xf]
        %v556 = vld [vmem:[#allocation6 + $0x4] sm:$0xf]
        %v557 = vld [vmem:[#allocation6 + $0x8] sm:$0xf]
        %v558 = vld [vmem:[#allocation6 + $0xc] sm:$0xf]
        %v559 = vld [vmem:[#allocation6 + $0x10] sm:$0xf]
        %v560 = vld [vmem:[#allocation6 + $0x14] sm:$0xf]
        %v561 = vld [vmem:[#allocation6 + $0x18] sm:$0xf]
        %v562 = vld [vmem:[#allocation6 + $0x1c] sm:$0xf]
        %v563 = vld [vmem:[#allocation6 + $0x20] sm:$0xf]
        %v564 = vld [vmem:[#allocation6 + $0x24] sm:$0xf]
        %v565 = vld [vmem:[#allocation6 + $0x28] sm:$0xf]
        %v566 = vld [vmem:[#allocation6 + $0x2c] sm:$0xf]
        %v567 = vld [vmem:[#allocation6 + $0x30] sm:$0xf]
        %v568 = vld [vmem:[#allocation6 + $0x34] sm:$0xf]
        %v569 = vld [vmem:[#allocation6 + $0x38] sm:$0xf]
        %v570 = vld [vmem:[#allocation6 + $0x3c] sm:$0xf]
        %v571 = vld [vmem:[%s6] sm:$0x1]
        %v573 = vlaneseq
        %v574 = vshrl.u32 %v573, 7
        %v575 = vsub.s32 0, %v574
        %v576 = vrot.slane %v571, %v575
        %v594 = vunpack.c.l.b16 %v555
        %v595 = vunpack.c.l.b16 %v556
        %v596 = vunpack.c.l.b16 %v557
        %v597 = vunpack.c.l.b16 %v558
        %v598 = vunpack.c.l.b16 %v559
        %v599 = vunpack.c.l.b16 %v560
        %v600 = vunpack.c.l.b16 %v561
        %v601 = vunpack.c.l.b16 %v562
        %v602 = vunpack.c.l.b16 %v563
        %v603 = vunpack.c.l.b16 %v564
        %v604 = vunpack.c.l.b16 %v565
        %v605 = vunpack.c.l.b16 %v566
        %v606 = vunpack.c.l.b16 %v567
        %v607 = vunpack.c.l.b16 %v568
        %v608 = vunpack.c.l.b16 %v569
        %v609 = vunpack.c.l.b16 %v570
        %v610 = vpack.c.b16 %v595, %v594
        %v611 = vpack.c.b16 %v597, %v596
        %v612 = vpack.c.b16 %v599, %v598
        %v613 = vpack.c.b16 %v601, %v600
        %v614 = vpack.c.b16 %v603, %v602
        %v615 = vpack.c.b16 %v605, %v604
        %v616 = vpack.c.b16 %v607, %v606
        %v617 = vpack.c.b16 %v609, %v608
        %626 = vmatprep.subr.bf16.mxu0 0
        %627 = vmatpush1.bf16.msra.mxu0 %v617
        %628 = vmatprep.subr.bf16.mxu0 0
        %629 = vmatpush1.bf16.msra.mxu0 %v616
        %630 = vmatprep.subr.bf16.mxu0 0
        %631 = vmatpush1.bf16.msra.mxu0 %v615
        %632 = vmatprep.subr.bf16.mxu0 0
        %633 = vmatpush1.bf16.msra.mxu0 %v614
        %634 = vmatprep.subr.bf16.mxu0 0
        %635 = vmatpush1.bf16.msra.mxu0 %v613
        %636 = vmatprep.subr.bf16.mxu0 0
        %637 = vmatpush1.bf16.msra.mxu0 %v612
        %638 = vmatprep.subr.bf16.mxu0 0
        %639 = vmatpush1.bf16.msra.mxu0 %v611
        %640 = vmatprep.subr.bf16.mxu0 0
        %641 = vmatpush1.bf16.msra.mxu0 %v610
        %642 = vmatprep.subr.bf16.mxu0 0
        %643 = vmatpush2.bf16.msra.mxu0 0
        %644 = vmatprep.subr.bf16.mxu0 0
        %645 = vmatpush2.bf16.msra.mxu0 0
        %646 = vmatprep.subr.bf16.mxu0 0
        %647 = vmatpush2.bf16.msra.mxu0 0
        %648 = vmatprep.subr.bf16.mxu0 0
        %649 = vmatpush2.bf16.msra.mxu0 0
        %650 = vmatprep.subr.bf16.mxu0 0
        %651 = vmatpush2.bf16.msra.mxu0 0
        %652 = vmatprep.subr.bf16.mxu0 0
        %653 = vmatpush2.bf16.msra.mxu0 0
        %654 = vmatprep.subr.bf16.mxu0 0
        %655 = vmatpush2.bf16.msra.mxu0 0
        %656 = vmatprep.subr.bf16.mxu0 0
        %657 = vmatpush2.bf16.msra.mxu0 0
        %658 = vmatprep.mubr.bf16.mxu0 0
        %659 = vmatmul.mubr.bf16.gmra.mxu0 %v554
        %v660 = vpop.f32.mrf.mxu0
        %v661 = vadd.f32 %v576, %v660
        %v662 = vpop.f32.mrf.mxu0
        %v663 = vpop.f32.mrf.mxu0
        %v664 = vpop.f32.mrf.mxu0
        %665 = vdwg.mxu0
        %v666 = vmul.f32 %v661, 0.5
        %v667 = vmul.f32 %v661, 0.70710677
        %v668 = verf.f32.pop %v667
        %v669 = vadd.f32 %v668, 1.0
        %v670 = vmul.f32 %v666, %v669
        %vm671 = vcmask 261120
        %672 = vst.msk [vmem:[%s317] sm:$0xff] %vm671, %v670
        %p673 = scmp.lt.s32.totalorder %s20, 1
        %s674 = scalar_select %p673, %s20, 1
        %s675 = smul.addr %s674, 8
        %s676 = scalar_lea.vmem %s7, %s675
        // Predicated region
        $region61: #{_fc_trunk_pallas.1} parent=47 // pred_check
          %p677 = pneg %p190
        $region62: #{_fc_trunk_pallas.1} parent=47 // pred_check_branch
          %679 = sbr.rel (%p677) target = $region64
        $region63: #{_fc_trunk_pallas.1} parent=47 // pred_region
          _
        $region64: #{_fc_trunk_pallas.1} parent=47 // pred_fallthru
          _
      $region48: #{_fc_trunk_pallas.1} parent=5 // pred_fallthru
        _
      %p680 = scmp.le.s32.totalorder 2, %s15
      // Predicated region
      $region65: #{_fc_trunk_pallas.1} parent=5 // pred_check
        %p681 = pneg %p680
      $region66: #{_fc_trunk_pallas.1} parent=5 // pred_check_branch
        %683 = sbr.rel (%p681) target = $region68
      $region67: #{_fc_trunk_pallas.1} parent=5 // pred_region
        %s684 = ssub.s32 %s15, 2
        // Predicated region
        $region69: #{_fc_trunk_pallas.1} parent=67 // pred_check
          %p685 = pneg %p196
        $region70: #{_fc_trunk_pallas.1} parent=67 // pred_check_branch
          %687 = sbr.rel (%p685) target = $region72
        $region71: #{_fc_trunk_pallas.1} parent=67 // pred_region
          %p688 = scmp.lt.s32.totalorder %s21, 1
          %s689 = scalar_select %p688, %s21, 1
          %s690 = smul.addr %s689, 8
          %s691 = scalar_lea.vmem %s7, %s690
        $region72: #{_fc_trunk_pallas.1} parent=67 // pred_fallthru
          _
      $region68: #{_fc_trunk_pallas.1} parent=5 // pred_fallthru
        _
    $region6: #{_fc_trunk_pallas.1} parent=1 // loop_footer
      %s19 = sadd.s32 1, %s15
    $region7: #{_fc_trunk_pallas.1} parent=1 // loop_footer_branch
      %14 = sbr.rel target = $region3
    $region8: #{_fc_trunk_pallas.1} parent=1 // loop_exit
      _
    %692 = vsyncpa [#allocation3], 1
    %s693 = scalar_lea.sflag [#allocation3], 1
    %694 = vsyncpa %s693, 1
    %695 = vsyncpa [#allocation5], 1

// kernel: _fc_trunk_pallas.1
$region0: #{_fc_trunk_pallas.1}
  #allocation0 [shape = 'u32[]', space=smem, size = 0x4, offset = 0x4, fixed_abs, tag = 'smem constant byte address 0x4 - core index']
  #allocation1 [shape = 'u32[144,128]{1,0:T(1,128)}', space=vmem, size = 0x12000, scoped, tag = 'internal scratch']
  %s0 = inlined_call_operand.vmem [shape: f32[16,128], index: 0, kind: input, shape index: {}]
  %s1 = inlined_call_operand.hbm [shape: bf16[128,128], index: 1, kind: input, shape index: {}]
  %s2 = inlined_call_operand.vmem [shape: f32[1,128], index: 2, kind: input, shape index: {}]
  %s3 = inlined_call_operand.hbm [shape: bf16[128,128], index: 3, kind: input, shape index: {}]
  %s4 = inlined_call_operand.vmem [shape: f32[1,128], index: 4, kind: input, shape index: {}]
  %s5 = inlined_call_operand.hbm [shape: bf16[128,128], index: 5, kind: input, shape index: {}]
  %s6 = inlined_call_operand.vmem [shape: f32[1,128], index: 6, kind: input, shape index: {}]
  %s7 = inlined_call_operand.vmem [shape: f32[16,32], index: 7, kind: output, shape index: {}]
  %s8 = sld [smem:[#allocation0]]
  $region73: #{_fc_trunk_pallas.1} parent=0
    _
  %s10 = ssub.s32 1, %s8
  %s11 = scalar_select 0, %s10, %s8
  $region1: #{_fc_trunk_pallas.1} parent=0
    #allocation2 [shape = 'u8[32768]{0}', space=vmem, size = 0x8000, scoped, tag = 'input window, operand 1, single buffered']
    #allocation3 [shape = 's32[2]{0}', space=sflag, size = 0x8, scoped, tag = 'scoped memory for _fc_trunk_pallas.1']
    #allocation4 [shape = 'u8[32768]{0}', space=vmem, size = 0x8000, scoped, tag = 'input window, operand 3, single buffered']
    #allocation5 [shape = 's32[1]{0}', space=sflag, size = 0x4, scoped, tag = 'scoped memory for _fc_trunk_pallas.1']
    #allocation6 [shape = 'u8[32768]{0}', space=vmem, size = 0x8000, scoped, tag = 'input window, operand 5, single buffered']
    %12 = vsyncpa [#allocation3], 0
    %13 = vsyncpa [#allocation5], 0
    loop: start=0, step=1, limit=4
    $region2: #{_fc_trunk_pallas.1} parent=1 // loop_pre_header
      _
    $region3: #{_fc_trunk_pallas.1} parent=1 // loop_header
      %s15 = sphi 0, %s19
      %p16 = scmp.ge.s32.totalorder %s15, 4
      %s25 = sphi 0, %s27
      %s28 = sphi 0, %s25
      %s29 = sphi 0, %s28
      %s45 = sphi 0, %s29
      %s49 = sphi 0, %s49
      %s51 = sphi 0, %s49
      %s52 = sphi 0, %s51
      %s66 = sphi 0, %s52
      %s70 = sphi 0, %s70
      %s72 = sphi 0, %s70
      %s73 = sphi 0, %s72
      %s87 = sphi 0, %s73
      %s91 = sphi 0, %s91
      %s93 = sphi 0, %s91
      %s94 = sphi 0, %s93
      %s108 = sphi 0, %s94
      %s112 = sphi 0, %s112
      %s114 = sphi 0, %s112
      %s115 = sphi 0, %s114
      %s129 = sphi 0, %s115
      %s133 = sphi 0, %s133
      %s135 = sphi 0, %s133
      %s136 = sphi 0, %s135
      %s150 = sphi 0, %s136
      %s154 = sphi 0, %s154
      %s156 = sphi 0, %s154
      %s157 = sphi 0, %s156
      %s171 = sphi 0, %s157
      %s177 = sphi 0, %s179
      %s180 = sphi 0, %s177
      %s181 = sphi 0, %s180
      %s197 = sphi 0, %s181
    $region4: #{_fc_trunk_pallas.1} parent=1 // loop_header_branch
      %18 = sbr.rel (%p16) target = $region8
    $region5: #{_fc_trunk_pallas.1} parent=1 // loop_body
      %s20 = ssub.s32 %s15, 1
      %s21 = ssub.s32 %s15, 2
      %s22 = sadd.s32 %s15, 1
      %s23 = ssub.s32 %s15, %s22
      %p24 = scmp.eq.s32.totalorder %s23, 0
      %s26 = sadd.s32 %s25, 1
      %s27 = scalar_select %p24, %s25, %s26
      %p30 = pneg %p24
      %p31 = scmp.eq.s32.totalorder %s15, 1
      %p32 = por %p30, %p31
      %p33 = scmp.ne.s32.totalorder %s25, %s28
      %p34 = scmp.eq.s32.totalorder %s15, 0
      %p35 = por %p33, %p34
      %p36 = scmp.ne.s32.totalorder %s25, %s28
      %p37 = scmp.eq.s32.totalorder %s20, 1
      %p38 = por %p36, %p37
      %p39 = scmp.ne.s32.totalorder %s28, %s29
      %p40 = scmp.eq.s32.totalorder %s20, 0
      %p41 = por %p39, %p40
      %p42 = scmp.ne.s32.totalorder %s28, %s29
      %p43 = scmp.eq.s32.totalorder %s21, 1
      %p44 = por %p42, %p43
      %p46 = scmp.ne.s32.totalorder %s29, %s45
      %p47 = scmp.eq.s32.totalorder %s21, 0
      %p48 = por %p46, %p47
      %s50 = sadd.s32 %s49, 1
      %p53 = scmp.eq.s32.totalorder %s15, 1
      %p54 = scmp.ne.s32.totalorder %s49, %s51
      %p55 = scmp.eq.s32.totalorder %s15, 0
      %p56 = por %p54, %p55
      %p57 = scmp.ne.s32.totalorder %s49, %s51
      %p58 = scmp.eq.s32.totalorder %s20, 1
      %p59 = por %p57, %p58
      %p60 = scmp.ne.s32.totalorder %s51, %s52
      %p61 = scmp.eq.s32.totalorder %s20, 0
      %p62 = por %p60, %p61
      %p63 = scmp.ne.s32.totalorder %s51, %s52
      %p64 = scmp.eq.s32.totalorder %s21, 1
      %p65 = por %p63, %p64
      %p67 = scmp.ne.s32.totalorder %s52, %s66
      %p68 = scmp.eq.s32.totalorder %s21, 0
      %p69 = por %p67, %p68
      %s71 = sadd.s32 %s70, 1
      %p74 = scmp.eq.s32.totalorder %s15, 1
      %p75 = scmp.ne.s32.totalorder %s70, %s72
      %p76 = scmp.eq.s32.totalorder %s15, 0
      %p77 = por %p75, %p76
      %p78 = scmp.ne.s32.totalorder %s70, %s72
      %p79 = scmp.eq.s32.totalorder %s20, 1
      %p80 = por %p78, %p79
      %p81 = scmp.ne.s32.totalorder %s72, %s73
      %p82 = scmp.eq.s32.totalorder %s20, 0
      %p83 = por %p81, %p82
      %p84 = scmp.ne.s32.totalorder %s72, %s73
      %p85 = scmp.eq.s32.totalorder %s21, 1
      %p86 = por %p84, %p85
      %p88 = scmp.ne.s32.totalorder %s73, %s87
      %p89 = scmp.eq.s32.totalorder %s21, 0
      %p90 = por %p88, %p89
      %s92 = sadd.s32 %s91, 1
      %p95 = scmp.eq.s32.totalorder %s15, 1
      %p96 = scmp.ne.s32.totalorder %s91, %s93
      %p97 = scmp.eq.s32.totalorder %s15, 0
      %p98 = por %p96, %p97
      %p99 = scmp.ne.s32.totalorder %s91, %s93
      %p100 = scmp.eq.s32.totalorder %s20, 1
      %p101 = por %p99, %p100
      %p102 = scmp.ne.s32.totalorder %s93, %s94
      %p103 = scmp.eq.s32.totalorder %s20, 0
      %p104 = por %p102, %p103
      %p105 = scmp.ne.s32.totalorder %s93, %s94
      %p106 = scmp.eq.s32.totalorder %s21, 1
      %p107 = por %p105, %p106
      %p109 = scmp.ne.s32.totalorder %s94, %s108
      %p110 = scmp.eq.s32.totalorder %s21, 0
      %p111 = por %p109, %p110
      %s113 = sadd.s32 %s112, 1
      %p116 = scmp.eq.s32.totalorder %s15, 1
      %p117 = scmp.ne.s32.totalorder %s112, %s114
      %p118 = scmp.eq.s32.totalorder %s15, 0
      %p119 = por %p117, %p118
      %p120 = scmp.ne.s32.totalorder %s112, %s114
      %p121 = scmp.eq.s32.totalorder %s20, 1
      %p122 = por %p120, %p121
      %p123 = scmp.ne.s32.totalorder %s114, %s115
      %p124 = scmp.eq.s32.totalorder %s20, 0
      %p125 = por %p123, %p124
      %p126 = scmp.ne.s32.totalorder %s114, %s115
      %p127 = scmp.eq.s32.totalorder %s21, 1
      %p128 = por %p126, %p127
      %p130 = scmp.ne.s32.totalorder %s115, %s129
      %p131 = scmp.eq.s32.totalorder %s21, 0
      %p132 = por %p130, %p131
      %s134 = sadd.s32 %s133, 1
      %p137 = scmp.eq.s32.totalorder %s15, 1
      %p138 = scmp.ne.s32.totalorder %s133, %s135
      %p139 = scmp.eq.s32.totalorder %s15, 0
      %p140 = por %p138, %p139
      %p141 = scmp.ne.s32.totalorder %s133, %s135
      %p142 = scmp.eq.s32.totalorder %s20, 1
      %p143 = por %p141, %p142
      %p144 = scmp.ne.s32.totalorder %s135, %s136
      %p145 = scmp.eq.s32.totalorder %s20, 0
      %p146 = por %p144, %p145
      %p147 = scmp.ne.s32.totalorder %s135, %s136
      %p148 = scmp.eq.s32.totalorder %s21, 1
      %p149 = por %p147, %p148
      %p151 = scmp.ne.s32.totalorder %s136, %s150
      %p152 = scmp.eq.s32.totalorder %s21, 0
      %p153 = por %p151, %p152
      %s155 = sadd.s32 %s154, 1
      %p158 = scmp.eq.s32.totalorder %s15, 1
      %p159 = scmp.ne.s32.totalorder %s154, %s156
      %p160 = scmp.eq.s32.totalorder %s15, 0
      %p161 = por %p159, %p160
      %p162 = scmp.ne.s32.totalorder %s154, %s156
      %p163 = scmp.eq.s32.totalorder %s20, 1
      %p164 = por %p162, %p163
      %p165 = scmp.ne.s32.totalorder %s156, %s157
      %p166 = scmp.eq.s32.totalorder %s20, 0
      %p167 = por %p165, %p166
      %p168 = scmp.ne.s32.totalorder %s156, %s157
      %p169 = scmp.eq.s32.totalorder %s21, 1
      %p170 = por %p168, %p169
      %p172 = scmp.ne.s32.totalorder %s157, %s171
      %p173 = scmp.eq.s32.totalorder %s21, 0
      %p174 = por %p172, %p173
      %s175 = ssub.s32 %s15, %s22
      %p176 = scmp.eq.s32.totalorder %s175, 0
      %s178 = sadd.s32 %s177, 1
      %s179 = scalar_select %p176, %s177, %s178
      %p182 = pneg %p176
      %p183 = scmp.eq.s32.totalorder %s15, 1
      %p184 = por %p182, %p183
      %p185 = scmp.ne.s32.totalorder %s177, %s180
      %p186 = scmp.eq.s32.totalorder %s15, 0
      %p187 = por %p185, %p186
      %p188 = scmp.ne.s32.totalorder %s177, %s180
      %p189 = scmp.eq.s32.totalorder %s20, 1
      %p190 = por %p188, %p189
      %p191 = scmp.ne.s32.totalorder %s180, %s181
      %p192 = scmp.eq.s32.totalorder %s20, 0
      %p193 = por %p191, %p192
      %p194 = scmp.ne.s32.totalorder %s180, %s181
      %p195 = scmp.eq.s32.totalorder %s21, 1
      %p196 = por %p194, %p195
      %p198 = scmp.ne.s32.totalorder %s181, %s197
      %p199 = scmp.eq.s32.totalorder %s21, 0
      %p200 = por %p198, %p199
      %p201 = scmp.le.s32.totalorder 1, %s15
      %p202 = scmp.lt.s32.totalorder %s15, 3
      %p203 = pnand %p201, %p202
      %p204 = pneg %p203
      // Predicated region
      $region9: #{_fc_trunk_pallas.1} parent=5 // pred_check
        _
      $region10: #{_fc_trunk_pallas.1} parent=5 // pred_check_branch
        %206 = sbr.rel (%p203) target = $region12
      $region11: #{_fc_trunk_pallas.1} parent=5 // pred_region
        %s207 = ssub.s32 %s15, 1
        // Predicated region
        $region13: #{_fc_trunk_pallas.1} parent=11 // pred_check
          %p208 = pneg %p62
        $region14: #{_fc_trunk_pallas.1} parent=11 // pred_check_branch
          %210 = sbr.rel (%p208) target = $region16
        $region15: #{_fc_trunk_pallas.1} parent=11 // pred_region
          %s212 = ssub.s32 1024, 1024
          %213 = vsyncadd [#allocation3], %s212
          %s214 = sshll.u32 [#allocation2], 4
          %s215 = int_to_ptr.vmem [resolvable:$true] %s214
          %220 = dma.hbm_to_vmem [thread:$0]  %s1, 1024, %s215, [#allocation3], 64, 64, 4
        $region16: #{_fc_trunk_pallas.1} parent=11 // pred_fallthru
          _
        // Predicated region
        $region17: #{_fc_trunk_pallas.1} parent=11 // pred_check
          %p221 = pneg %p83
        $region18: #{_fc_trunk_pallas.1} parent=11 // pred_check_branch
          %223 = sbr.rel (%p221) target = $region20
        $region19: #{_fc_trunk_pallas.1} parent=11 // pred_region
          _
        $region20: #{_fc_trunk_pallas.1} parent=11 // pred_fallthru
          _
        // Predicated region
        $region21: #{_fc_trunk_pallas.1} parent=11 // pred_check
          %p224 = pneg %p104
        $region22: #{_fc_trunk_pallas.1} parent=11 // pred_check_branch
          %226 = sbr.rel (%p224) target = $region24
        $region23: #{_fc_trunk_pallas.1} parent=11 // pred_region
          %s228 = ssub.s32 1024, 1024
          %229 = vsyncadd [#allocation5], %s228
          %s230 = sshll.u32 [#allocation4], 4
          %s231 = int_to_ptr.vmem [resolvable:$true] %s230
          %236 = dma.hbm_to_vmem [thread:$0]  %s3, 1024, %s231, [#allocation5], 64, 64, 4
        $region24: #{_fc_trunk_pallas.1} parent=11 // pred_fallthru
          _
        // Predicated region
        $region25: #{_fc_trunk_pallas.1} parent=11 // pred_check
          %p237 = pneg %p125
        $region26: #{_fc_trunk_pallas.1} parent=11 // pred_check_branch
          %239 = sbr.rel (%p237) target = $region28
        $region27: #{_fc_trunk_pallas.1} parent=11 // pred_region
          _
        $region28: #{_fc_trunk_pallas.1} parent=11 // pred_fallthru
          _
        // Predicated region
        $region29: #{_fc_trunk_pallas.1} parent=11 // pred_check
          %p240 = pneg %p146
        $region30: #{_fc_trunk_pallas.1} parent=11 // pred_check_branch
          %242 = sbr.rel (%p240) target = $region32
        $region31: #{_fc_trunk_pallas.1} parent=11 // pred_region
          %s244 = ssub.s32 1024, 1024
          %245 = vsyncadd [#allocation5], %s244
          %s246 = sshll.u32 [#allocation6], 4
          %s247 = int_to_ptr.vmem [resolvable:$true] %s246
          %252 = dma.hbm_to_vmem [thread:$0]  %s5, 1024, %s247, [#allocation5], 64, 64, 4
        $region32: #{_fc_trunk_pallas.1} parent=11 // pred_fallthru
          _
        // Predicated region
        $region33: #{_fc_trunk_pallas.1} parent=11 // pred_check
          %p253 = pneg %p167
        $region34: #{_fc_trunk_pallas.1} parent=11 // pred_check_branch
          %255 = sbr.rel (%p253) target = $region36
        $region35: #{_fc_trunk_pallas.1} parent=11 // pred_region
          _
        $region36: #{_fc_trunk_pallas.1} parent=11 // pred_fallthru
          _
      $region12: #{_fc_trunk_pallas.1} parent=5 // pred_fallthru
        _
      %p256 = scmp.lt.s32.totalorder %s15, 2
      // Predicated region
      $region37: #{_fc_trunk_pallas.1} parent=5 // pred_check
        %p257 = pneg %p256
      $region38: #{_fc_trunk_pallas.1} parent=5 // pred_check_branch
        %259 = sbr.rel (%p257) target = $region40
      $region39: #{_fc_trunk_pallas.1} parent=5 // pred_region
        // Predicated region
        $region41: #{_fc_trunk_pallas.1} parent=39 // pred_check
          %p260 = pneg %p35
        $region42: #{_fc_trunk_pallas.1} parent=39 // pred_check_branch
          %262 = sbr.rel (%p260) target = $region44
        $region43: #{_fc_trunk_pallas.1} parent=39 // pred_region
          %p263 = scmp.lt.s32.totalorder %s15, 1
          %s264 = scalar_select %p263, %s15, 1
          %s265 = smul.addr %s264, 8
          %s266 = scalar_lea.vmem %s0, %s265
        $region44: #{_fc_trunk_pallas.1} parent=39 // pred_fallthru
          _
      $region40: #{_fc_trunk_pallas.1} parent=5 // pred_fallthru
        _
      %p267 = scmp.le.s32.totalorder 1, %s15
      %p268 = scmp.lt.s32.totalorder %s15, 3
      %p269 = pnand %p267, %p268
      %p270 = pneg %p269
      // Predicated region
      $region45: #{_fc_trunk_pallas.1} parent=5 // pred_check
        _
      $region46: #{_fc_trunk_pallas.1} parent=5 // pred_check_branch
        %272 = sbr.rel (%p269) target = $region48
      $region47: #{_fc_trunk_pallas.1} parent=5 // pred_region
        %s273 = ssub.s32 %s15, 1
        // Predicated region
        $region49: #{_fc_trunk_pallas.1} parent=47 // pred_check
          %p274 = pneg %p62
        $region50: #{_fc_trunk_pallas.1} parent=47 // pred_check_branch
          %276 = sbr.rel (%p274) target = $region52
        $region51: #{_fc_trunk_pallas.1} parent=47 // pred_region
          %277 = dma.done [#allocation3], 1024
        $region52: #{_fc_trunk_pallas.1} parent=47 // pred_fallthru
          _
        // Predicated region
        $region53: #{_fc_trunk_pallas.1} parent=47 // pred_check
          %p278 = pneg %p104
        $region54: #{_fc_trunk_pallas.1} parent=47 // pred_check_branch
          %280 = sbr.rel (%p278) target = $region56
        $region55: #{_fc_trunk_pallas.1} parent=47 // pred_region
          %281 = dma.done [#allocation5], 1024
        $region56: #{_fc_trunk_pallas.1} parent=47 // pred_fallthru
          _
        // Predicated region
        $region57: #{_fc_trunk_pallas.1} parent=47 // pred_check
          %p282 = pneg %p146
        $region58: #{_fc_trunk_pallas.1} parent=47 // pred_check_branch
          %284 = sbr.rel (%p282) target = $region60
        $region59: #{_fc_trunk_pallas.1} parent=47 // pred_region
          %285 = dma.done [#allocation5], 1024
        $region60: #{_fc_trunk_pallas.1} parent=47 // pred_fallthru
          _
        %p286 = scmp.lt.s32.totalorder %s20, 1
        %s287 = scalar_select %p286, %s20, 1
        %s288 = smul.addr %s287, 8
        %s289 = scalar_lea.vmem %s0, %s288
        %p290 = pneg %p41
        %p291 = pneg %p38
        %p292 = pneg %p62
        %p293 = pneg %p59
        %p294 = pneg %p83
        %p295 = pneg %p80
        %p296 = pneg %p104
        %p297 = pneg %p101
        %p298 = pneg %p125
        %p299 = pneg %p122
        %p300 = pneg %p146
        %p301 = pneg %p143
        %p302 = pneg %p167
        %p303 = pneg %p164
        %p304 = pneg %p193
        %p305 = pneg %p190
        %p306 = scmp.lt.s32.totalorder %s20, 1
        %s307 = scalar_select %p306, %s20, 1
        %s308 = smul.addr %s307, 8
        %s309 = scalar_lea.vmem %s7, %s308
        %p310 = scmp.lt.s32.totalorder %s20, 1
        %s311 = scalar_select %p310, %s20, 1
        %s312 = smul.addr %s311, 8
        %s313 = scalar_lea.vmem %s0, %s312
        %p314 = scmp.lt.s32.totalorder %s20, 1
        %s315 = scalar_select %p314, %s20, 1
        %s316 = smul.addr %s315, 8
        %s317 = scalar_lea.vmem %s7, %s316
        %v319 = vld [vmem:[%s313] sm:$0xff]
        %v320 = vpack.c.bf16 %v319, %v319
        %v321 = vld [vmem:[#allocation2] sm:$0xf]
        %v322 = vld [vmem:[#allocation2 + $0x4] sm:$0xf]
        %v323 = vld [vmem:[#allocation2 + $0x8] sm:$0xf]
        %v324 = vld [vmem:[#allocation2 + $0xc] sm:$0xf]
        %v325 = vld [vmem:[#allocation2 + $0x10] sm:$0xf]
        %v326 = vld [vmem:[#allocation2 + $0x14] sm:$0xf]
        %v327 = vld [vmem:[#allocation2 + $0x18] sm:$0xf]
        %v328 = vld [vmem:[#allocation2 + $0x1c] sm:$0xf]
        %v329 = vld [vmem:[#allocation2 + $0x20] sm:$0xf]
        %v330 = vld [vmem:[#allocation2 + $0x24] sm:$0xf]
        %v331 = vld [vmem:[#allocation2 + $0x28] sm:$0xf]
        %v332 = vld [vmem:[#allocation2 + $0x2c] sm:$0xf]
        %v333 = vld [vmem:[#allocation2 + $0x30] sm:$0xf]
        %v334 = vld [vmem:[#allocation2 + $0x34] sm:$0xf]
        %v335 = vld [vmem:[#allocation2 + $0x38] sm:$0xf]
        %v336 = vld [vmem:[#allocation2 + $0x3c] sm:$0xf]
        %v337 = vld [vmem:[%s2] sm:$0x1]
        %v339 = vlaneseq
        %v340 = vshrl.u32 %v339, 7
        %v341 = vsub.s32 0, %v340
        %v342 = vrot.slane %v337, %v341
        %v360 = vunpack.c.l.b16 %v321
        %v361 = vunpack.c.l.b16 %v322
        %v362 = vunpack.c.l.b16 %v323
        %v363 = vunpack.c.l.b16 %v324
        %v364 = vunpack.c.l.b16 %v325
        %v365 = vunpack.c.l.b16 %v326
        %v366 = vunpack.c.l.b16 %v327
        %v367 = vunpack.c.l.b16 %v328
        %v368 = vunpack.c.l.b16 %v329
        %v369 = vunpack.c.l.b16 %v330
        %v370 = vunpack.c.l.b16 %v331
        %v371 = vunpack.c.l.b16 %v332
        %v372 = vunpack.c.l.b16 %v333
        %v373 = vunpack.c.l.b16 %v334
        %v374 = vunpack.c.l.b16 %v335
        %v375 = vunpack.c.l.b16 %v336
        %v376 = vpack.c.b16 %v361, %v360
        %v377 = vpack.c.b16 %v363, %v362
        %v378 = vpack.c.b16 %v365, %v364
        %v379 = vpack.c.b16 %v367, %v366
        %v380 = vpack.c.b16 %v369, %v368
        %v381 = vpack.c.b16 %v371, %v370
        %v382 = vpack.c.b16 %v373, %v372
        %v383 = vpack.c.b16 %v375, %v374
        %392 = vmatprep.subr.bf16.mxu0 0
        %393 = vmatpush1.bf16.msra.mxu0 %v383
        %394 = vmatprep.subr.bf16.mxu0 0
        %395 = vmatpush1.bf16.msra.mxu0 %v382
        %396 = vmatprep.subr.bf16.mxu0 0
        %397 = vmatpush1.bf16.msra.mxu0 %v381
        %398 = vmatprep.subr.bf16.mxu0 0
        %399 = vmatpush1.bf16.msra.mxu0 %v380
        %400 = vmatprep.subr.bf16.mxu0 0
        %401 = vmatpush1.bf16.msra.mxu0 %v379
        %402 = vmatprep.subr.bf16.mxu0 0
        %403 = vmatpush1.bf16.msra.mxu0 %v378
        %404 = vmatprep.subr.bf16.mxu0 0
        %405 = vmatpush1.bf16.msra.mxu0 %v377
        %406 = vmatprep.subr.bf16.mxu0 0
        %407 = vmatpush1.bf16.msra.mxu0 %v376
        %408 = vmatprep.subr.bf16.mxu0 0
        %409 = vmatpush2.bf16.msra.mxu0 0
        %410 = vmatprep.subr.bf16.mxu0 0
        %411 = vmatpush2.bf16.msra.mxu0 0
        %412 = vmatprep.subr.bf16.mxu0 0
        %413 = vmatpush2.bf16.msra.mxu0 0
        %414 = vmatprep.subr.bf16.mxu0 0
        %415 = vmatpush2.bf16.msra.mxu0 0
        %416 = vmatprep.subr.bf16.mxu0 0
        %417 = vmatpush2.bf16.msra.mxu0 0
        %418 = vmatprep.subr.bf16.mxu0 0
        %419 = vmatpush2.bf16.msra.mxu0 0
        %420 = vmatprep.subr.bf16.mxu0 0
        %421 = vmatpush2.bf16.msra.mxu0 0
        %422 = vmatprep.subr.bf16.mxu0 0
        %423 = vmatpush2.bf16.msra.mxu0 0
        %424 = vmatprep.mubr.bf16.mxu0 0
        %425 = vmatmul.mubr.bf16.gmra.mxu0 %v320
        %v426 = vpop.f32.mrf.mxu0
        %v427 = vadd.f32 %v342, %v426
        %v428 = vpop.f32.mrf.mxu0
        %v429 = vpop.f32.mrf.mxu0
        %v430 = vpop.f32.mrf.mxu0
        %431 = vdwg.mxu0
        %v432 = vmul.f32 %v427, 0.5
        %v433 = vmul.f32 %v427, 0.70710677
        %v434 = verf.f32.pop %v433
        %v435 = vadd.f32 %v434, 1.0
        %v436 = vmul.f32 %v432, %v435
        %v437 = vpack.c.bf16 %v436, %v436
        %v438 = vld [vmem:[#allocation4] sm:$0xf]
        %v439 = vld [vmem:[#allocation4 + $0x4] sm:$0xf]
        %v440 = vld [vmem:[#allocation4 + $0x8] sm:$0xf]
        %v441 = vld [vmem:[#allocation4 + $0xc] sm:$0xf]
        %v442 = vld [vmem:[#allocation4 + $0x10] sm:$0xf]
        %v443 = vld [vmem:[#allocation4 + $0x14] sm:$0xf]
        %v444 = vld [vmem:[#allocation4 + $0x18] sm:$0xf]
        %v445 = vld [vmem:[#allocation4 + $0x1c] sm:$0xf]
        %v446 = vld [vmem:[#allocation4 + $0x20] sm:$0xf]
        %v447 = vld [vmem:[#allocation4 + $0x24] sm:$0xf]
        %v448 = vld [vmem:[#allocation4 + $0x28] sm:$0xf]
        %v449 = vld [vmem:[#allocation4 + $0x2c] sm:$0xf]
        %v450 = vld [vmem:[#allocation4 + $0x30] sm:$0xf]
        %v451 = vld [vmem:[#allocation4 + $0x34] sm:$0xf]
        %v452 = vld [vmem:[#allocation4 + $0x38] sm:$0xf]
        %v453 = vld [vmem:[#allocation4 + $0x3c] sm:$0xf]
        %v454 = vld [vmem:[%s4] sm:$0x1]
        %v456 = vlaneseq
        %v457 = vshrl.u32 %v456, 7
        %v458 = vsub.s32 0, %v457
        %v459 = vrot.slane %v454, %v458
        %v477 = vunpack.c.l.b16 %v438
        %v478 = vunpack.c.l.b16 %v439
        %v479 = vunpack.c.l.b16 %v440
        %v480 = vunpack.c.l.b16 %v441
        %v481 = vunpack.c.l.b16 %v442
        %v482 = vunpack.c.l.b16 %v443
        %v483 = vunpack.c.l.b16 %v444
        %v484 = vunpack.c.l.b16 %v445
        %v485 = vunpack.c.l.b16 %v446
        %v486 = vunpack.c.l.b16 %v447
        %v487 = vunpack.c.l.b16 %v448
        %v488 = vunpack.c.l.b16 %v449
        %v489 = vunpack.c.l.b16 %v450
        %v490 = vunpack.c.l.b16 %v451
        %v491 = vunpack.c.l.b16 %v452
        %v492 = vunpack.c.l.b16 %v453
        %v493 = vpack.c.b16 %v478, %v477
        %v494 = vpack.c.b16 %v480, %v479
        %v495 = vpack.c.b16 %v482, %v481
        %v496 = vpack.c.b16 %v484, %v483
        %v497 = vpack.c.b16 %v486, %v485
        %v498 = vpack.c.b16 %v488, %v487
        %v499 = vpack.c.b16 %v490, %v489
        %v500 = vpack.c.b16 %v492, %v491
        %509 = vmatprep.subr.bf16.mxu0 0
        %510 = vmatpush1.bf16.msra.mxu0 %v500
        %511 = vmatprep.subr.bf16.mxu0 0
        %512 = vmatpush1.bf16.msra.mxu0 %v499
        %513 = vmatprep.subr.bf16.mxu0 0
        %514 = vmatpush1.bf16.msra.mxu0 %v498
        %515 = vmatprep.subr.bf16.mxu0 0
        %516 = vmatpush1.bf16.msra.mxu0 %v497
        %517 = vmatprep.subr.bf16.mxu0 0
        %518 = vmatpush1.bf16.msra.mxu0 %v496
        %519 = vmatprep.subr.bf16.mxu0 0
        %520 = vmatpush1.bf16.msra.mxu0 %v495
        %521 = vmatprep.subr.bf16.mxu0 0
        %522 = vmatpush1.bf16.msra.mxu0 %v494
        %523 = vmatprep.subr.bf16.mxu0 0
        %524 = vmatpush1.bf16.msra.mxu0 %v493
        %525 = vmatprep.subr.bf16.mxu0 0
        %526 = vmatpush2.bf16.msra.mxu0 0
        %527 = vmatprep.subr.bf16.mxu0 0
        %528 = vmatpush2.bf16.msra.mxu0 0
        %529 = vmatprep.subr.bf16.mxu0 0
        %530 = vmatpush2.bf16.msra.mxu0 0
        %531 = vmatprep.subr.bf16.mxu0 0
        %532 = vmatpush2.bf16.msra.mxu0 0
        %533 = vmatprep.subr.bf16.mxu0 0
        %534 = vmatpush2.bf16.msra.mxu0 0
        %535 = vmatprep.subr.bf16.mxu0 0
        %536 = vmatpush2.bf16.msra.mxu0 0
        %537 = vmatprep.subr.bf16.mxu0 0
        %538 = vmatpush2.bf16.msra.mxu0 0
        %539 = vmatprep.subr.bf16.mxu0 0
        %540 = vmatpush2.bf16.msra.mxu0 0
        %541 = vmatprep.mubr.bf16.mxu0 0
        %542 = vmatmul.mubr.bf16.gmra.mxu0 %v437
        %v543 = vpop.f32.mrf.mxu0
        %v544 = vadd.f32 %v459, %v543
        %v545 = vpop.f32.mrf.mxu0
        %v546 = vpop.f32.mrf.mxu0
        %v547 = vpop.f32.mrf.mxu0
        %548 = vdwg.mxu0
        %v549 = vmul.f32 %v544, 0.5
        %v550 = vmul.f32 %v544, 0.70710677
        %v551 = verf.f32.pop %v550
        %v552 = vadd.f32 %v551, 1.0
        %v553 = vmul.f32 %v549, %v552
        %v554 = vpack.c.bf16 %v553, %v553
        %v555 = vld [vmem:[#allocation6] sm:$0xf]
        %v556 = vld [vmem:[#allocation6 + $0x4] sm:$0xf]
        %v557 = vld [vmem:[#allocation6 + $0x8] sm:$0xf]
        %v558 = vld [vmem:[#allocation6 + $0xc] sm:$0xf]
        %v559 = vld [vmem:[#allocation6 + $0x10] sm:$0xf]
        %v560 = vld [vmem:[#allocation6 + $0x14] sm:$0xf]
        %v561 = vld [vmem:[#allocation6 + $0x18] sm:$0xf]
        %v562 = vld [vmem:[#allocation6 + $0x1c] sm:$0xf]
        %v563 = vld [vmem:[#allocation6 + $0x20] sm:$0xf]
        %v564 = vld [vmem:[#allocation6 + $0x24] sm:$0xf]
        %v565 = vld [vmem:[#allocation6 + $0x28] sm:$0xf]
        %v566 = vld [vmem:[#allocation6 + $0x2c] sm:$0xf]
        %v567 = vld [vmem:[#allocation6 + $0x30] sm:$0xf]
        %v568 = vld [vmem:[#allocation6 + $0x34] sm:$0xf]
        %v569 = vld [vmem:[#allocation6 + $0x38] sm:$0xf]
        %v570 = vld [vmem:[#allocation6 + $0x3c] sm:$0xf]
        %v571 = vld [vmem:[%s6] sm:$0x1]
        %v573 = vlaneseq
        %v574 = vshrl.u32 %v573, 7
        %v575 = vsub.s32 0, %v574
        %v576 = vrot.slane %v571, %v575
        %v594 = vunpack.c.l.b16 %v555
        %v595 = vunpack.c.l.b16 %v556
        %v596 = vunpack.c.l.b16 %v557
        %v597 = vunpack.c.l.b16 %v558
        %v598 = vunpack.c.l.b16 %v559
        %v599 = vunpack.c.l.b16 %v560
        %v600 = vunpack.c.l.b16 %v561
        %v601 = vunpack.c.l.b16 %v562
        %v602 = vunpack.c.l.b16 %v563
        %v603 = vunpack.c.l.b16 %v564
        %v604 = vunpack.c.l.b16 %v565
        %v605 = vunpack.c.l.b16 %v566
        %v606 = vunpack.c.l.b16 %v567
        %v607 = vunpack.c.l.b16 %v568
        %v608 = vunpack.c.l.b16 %v569
        %v609 = vunpack.c.l.b16 %v570
        %v610 = vpack.c.b16 %v595, %v594
        %v611 = vpack.c.b16 %v597, %v596
        %v612 = vpack.c.b16 %v599, %v598
        %v613 = vpack.c.b16 %v601, %v600
        %v614 = vpack.c.b16 %v603, %v602
        %v615 = vpack.c.b16 %v605, %v604
        %v616 = vpack.c.b16 %v607, %v606
        %v617 = vpack.c.b16 %v609, %v608
        %626 = vmatprep.subr.bf16.mxu0 0
        %627 = vmatpush1.bf16.msra.mxu0 %v617
        %628 = vmatprep.subr.bf16.mxu0 0
        %629 = vmatpush1.bf16.msra.mxu0 %v616
        %630 = vmatprep.subr.bf16.mxu0 0
        %631 = vmatpush1.bf16.msra.mxu0 %v615
        %632 = vmatprep.subr.bf16.mxu0 0
        %633 = vmatpush1.bf16.msra.mxu0 %v614
        %634 = vmatprep.subr.bf16.mxu0 0
        %635 = vmatpush1.bf16.msra.mxu0 %v613
        %636 = vmatprep.subr.bf16.mxu0 0
        %637 = vmatpush1.bf16.msra.mxu0 %v612
        %638 = vmatprep.subr.bf16.mxu0 0
        %639 = vmatpush1.bf16.msra.mxu0 %v611
        %640 = vmatprep.subr.bf16.mxu0 0
        %641 = vmatpush1.bf16.msra.mxu0 %v610
        %642 = vmatprep.subr.bf16.mxu0 0
        %643 = vmatpush2.bf16.msra.mxu0 0
        %644 = vmatprep.subr.bf16.mxu0 0
        %645 = vmatpush2.bf16.msra.mxu0 0
        %646 = vmatprep.subr.bf16.mxu0 0
        %647 = vmatpush2.bf16.msra.mxu0 0
        %648 = vmatprep.subr.bf16.mxu0 0
        %649 = vmatpush2.bf16.msra.mxu0 0
        %650 = vmatprep.subr.bf16.mxu0 0
        %651 = vmatpush2.bf16.msra.mxu0 0
        %652 = vmatprep.subr.bf16.mxu0 0
        %653 = vmatpush2.bf16.msra.mxu0 0
        %654 = vmatprep.subr.bf16.mxu0 0
        %655 = vmatpush2.bf16.msra.mxu0 0
        %656 = vmatprep.subr.bf16.mxu0 0
        %657 = vmatpush2.bf16.msra.mxu0 0
        %658 = vmatprep.mubr.bf16.mxu0 0
        %659 = vmatmul.mubr.bf16.gmra.mxu0 %v554
        %v660 = vpop.f32.mrf.mxu0
        %v661 = vadd.f32 %v576, %v660
        %v662 = vpop.f32.mrf.mxu0
        %v663 = vpop.f32.mrf.mxu0
        %v664 = vpop.f32.mrf.mxu0
        %665 = vdwg.mxu0
        %v666 = vmul.f32 %v661, 0.5
        %v667 = vmul.f32 %v661, 0.70710677
        %v668 = verf.f32.pop %v667
        %v669 = vadd.f32 %v668, 1.0
        %v670 = vmul.f32 %v666, %v669
        %vm671 = vcmask 261120
        %672 = vst.msk [vmem:[%s317] sm:$0xff] %vm671, %v670
        %p673 = scmp.lt.s32.totalorder %s20, 1
        %s674 = scalar_select %p673, %s20, 1
        %s675 = smul.addr %s674, 8
        %s676 = scalar_lea.vmem %s7, %s675
        // Predicated region
        $region61: #{_fc_trunk_pallas.1} parent=47 // pred_check
          %p677 = pneg %p190
        $region62: #{_fc_trunk_pallas.1} parent=47 // pred_check_branch
          %679 = sbr.rel (%p677) target = $region64
        $region63: #{_fc_trunk_pallas.1} parent=47 // pred_region
          _
        $region64: #{_fc_trunk_pallas.1} parent=47 // pred_fallthru
          _
      $region48: #{_fc_trunk_pallas.1} parent=5 // pred_fallthru
        _
      %p680 = scmp.le.s32.totalorder 2, %s15
      // Predicated region
      $region65: #{_fc_trunk_pallas.1} parent=5 // pred_check
        %p681 = pneg %p680
      $region66: #{_fc_trunk_pallas.1} parent=5 // pred_check_branch
        %683 = sbr.rel (%p681) target = $region68
      $region67: #{_fc_trunk_pallas.1} parent=5 // pred_region
        %s684 = ssub.s32 %s15, 2
        // Predicated region
        $region69: #{_fc_trunk_pallas.1} parent=67 // pred_check
          %p685 = pneg %p196
        $region70: #{_fc_trunk_pallas.1} parent=67 // pred_check_branch
          %687 = sbr.rel (%p685) target = $region72
        $region71: #{_fc_trunk_pallas.1} parent=67 // pred_region
          %p688 = scmp.lt.s32.totalorder %s21, 1
          %s689 = scalar_select %p688, %s21, 1
          %s690 = smul.addr %s689, 8
          %s691 = scalar_lea.vmem %s7, %s690
        $region72: #{_fc_trunk_pallas.1} parent=67 // pred_fallthru
          _
      $region68: #{_fc_trunk_pallas.1} parent=5 // pred_fallthru
        _
    $region6: #{_fc_trunk_pallas.1} parent=1 // loop_footer
      %s19 = sadd.s32 1, %s15
    $region7: #{_fc_trunk_pallas.1} parent=1 // loop_footer_branch
      %14 = sbr.rel target = $region3
    $region8: #{_fc_trunk_pallas.1} parent=1 // loop_exit
      _
    %692 = vsyncpa [#allocation3], 1
    %s693 = scalar_lea.sflag [#allocation3], 1
    %694 = vsyncpa %s693, 1
    %695 = vsyncpa [#allocation5], 1

</llo_original>
